<compile_context>
chip_gen: v6e
topology: v6e:2x2x1
jax: 0.10.0
libtpu: 0.0.40
codegen_flags: <defaults>
</compile_context>

<pallas_src>
import jax
import jax.numpy as jnp
from jax.experimental import pallas as pl
from jax.experimental.pallas import tpu as pltpu

LN_EPS = 1e-5
_MAX_UNITS_PER_BLOCK = 32   # bounds the unrolled lane-split relayout inside the kernel


# ----------------------------------------------------------------------------
# Kernel: LayerNorm -> Linear#1 -> GRU step -> Linear#2 for a block of ub units.
# ----------------------------------------------------------------------------
def _aggregator_kernel(x_ref, gamma_ref, beta_ref, h0_ref,
                       w1_ref, wgru_ref, w2_ref, bias_ref,
                       o_ref, h_out_ref):
    f32 = jnp.float32
    ub, b, dh = h0_ref.shape
    du = w2_ref.shape[-1]
    cdt = w1_ref.dtype                                         # matmul input dtype

    # ---- LayerNorm over dim_inputs (unit-invariant; trivial per-block recompute) ----
    x = x_ref[...].astype(f32)                                 # (B, Din)
    mu = jnp.mean(x, axis=-1, keepdims=True)
    xc = x - mu
    var = jnp.mean(xc * xc, axis=-1, keepdims=True)
    xn = xc * jax.lax.rsqrt(var + LN_EPS)
    xn = xn * gamma_ref[...].astype(f32) + beta_ref[...].astype(f32)

    # ---- Packed per-unit biases: rows [b1, b_r, b_z, bi_n, bh_n, b2] (lane-padded) ----
    bias = bias_ref[...].astype(f32)                           # (ub, 6, dw)
    b1 = bias[:, 0:1, :dh]
    b_r = bias[:, 1:2, :dh]
    b_z = bias[:, 2:3, :dh]
    bi_n = bias[:, 3:4, :dh]
    bh_n = bias[:, 4:5, :dh]
    b2 = bias[:, 5:6, :du]

    def bmm(a, w):
        # (ub, B, K) x (ub, K, N) -> (ub, B, N), batched over units, f32 accumulation.
        return jax.lax.dot_general(
            a.astype(cdt), w,
            dimension_numbers=(((2,), (1,)), ((0,), (0,))),
            preferred_element_type=f32)

    # ---- UnitWiseLinear #1 as ONE lane-dense 2-D matmul: (B, Din) x (Din, ub*Dh) ----
    h_lin2 = jnp.dot(xn.astype(cdt), w1_ref[...],
                     preferred_element_type=f32)               # (B, ub*Dh) f32
    # Unit-major relayout via static lane slices (ub is a small compile-time constant).
    h_lin = jnp.stack([h_lin2[:, u * dh:(u + 1) * dh] for u in range(ub)],
                      axis=0) + b1                             # (ub, B, Dh) f32

    # ---- UnitWiseGRU single step (torch.nn.GRUCell gate math, gates r, z, n) ----
    wi = wgru_ref[0]                                           # (ub, Dh, 3*Dh) fused gates
    wh = wgru_ref[1]                                           # (ub, Dh, 3*Dh)
    h0 = h0_ref[...].astype(f32)                               # (ub, B, Dh)
    gi = bmm(h_lin, wi)                                        # (ub, B, 3*Dh)
    gh = bmm(h0, wh)                                           # (ub, B, 3*Dh)
    r = jax.nn.sigmoid(gi[..., 0 * dh:1 * dh] + gh[..., 0 * dh:1 * dh] + b_r)
    z = jax.nn.sigmoid(gi[..., 1 * dh:2 * dh] + gh[..., 1 * dh:2 * dh] + b_z)
    n = jnp.tanh(gi[..., 2 * dh:3 * dh] + bi_n + r * (gh[..., 2 * dh:3 * dh] + bh_n))
    h_new = (1.0 - z) * n + z * h0                             # (ub, B, Dh)
    # TODO(synk): max_bptt only gates hidden-state detach during backprop; no forward effect.

    # ---- UnitWiseLinear #2 ----
    out = bmm(h_new, w2_ref[...]) + b2                         # (ub, B, du)

    h_out_ref[...] = h_new.astype(h_out_ref.dtype)
    o_ref[...] = out.astype(o_ref.dtype)                       # sublane-dense, no transpose


# ----------------------------------------------------------------------------
# Host-side parameter prep: w1 lane-packing, gate fusion, bias packing, casts.
# ----------------------------------------------------------------------------
def _prepare_kernel_params(params, weights_dtype, ub):
    U, din, dh = params["w1"].shape
    du = params["w2"].shape[-1]
    g = U // ub
    dw = max(dh, du)
    cast = lambda a: a.astype(weights_dtype)

    # W1 packed so Linear #1 is one (Din, ub*Dh) matmul per grid block.
    w1 = (params["w1"].reshape(g, ub, din, dh)
          .transpose(0, 2, 1, 3).reshape(g, din, ub * dh))

    # GRU weights: gates already fused along N; stack input/hidden paths -> one DMA.
    wgru = jnp.stack([params["wi"], params["wh"]], axis=0)     # (2, U, Dh, 3*Dh)

    bi, bh = params["bi"][:, 0, :], params["bh"][:, 0, :]      # (U, 3*Dh)
    pad = lambda a: jnp.pad(a, ((0, 0), (0, dw - a.shape[-1])))
    bias = jnp.stack(
        [pad(params["b1"][:, 0, :]),                           # b1
         pad(bi[:, 0 * dh:1 * dh] + bh[:, 0 * dh:1 * dh]),     # r-gate bias (bi_r + bh_r)
         pad(bi[:, 1 * dh:2 * dh] + bh[:, 1 * dh:2 * dh]),     # z-gate bias
         pad(bi[:, 2 * dh:3 * dh]),                            # bi_n
         pad(bh[:, 2 * dh:3 * dh]),                            # bh_n (stays inside r*(...))
         pad(params["b2"][:, 0, :])],                          # b2
        axis=1).astype(jnp.float32)                            # (U, 6, dw)

    return {"w1": cast(w1), "wgru": cast(wgru), "w2": cast(params["w2"]), "bias": bias}


# ----------------------------------------------------------------------------
# Per-generation VMEM sizing and block-size selection.
# ----------------------------------------------------------------------------
def _device_config():
    kind = jax.devices()[0].device_kind.lower()
    if "v7" in kind:
        # 64 MiB physical VMEM, 2 TensorCores: smaller budget, keep >= 4 grid blocks.
        return 52 * 2 ** 20, 20 * 2 ** 20, 4
    # v4 / v5e / v5p / v6e: 128 MiB physical VMEM, 1 TensorCore per chip.
    return 96 * 2 ** 20, 40 * 2 ** 20, 2


def _rup(x, m):
    return (x + m - 1) // m * m


def _blk_bytes(shape, itemsize):
    lead = 1
    for d in shape[:-2]:
        lead *= d
    return lead * _rup(shape[-2], 8) * _rup(shape[-1], 128) * itemsize


def _choose_units_per_block(U, B, din, dh, du, wbytes, vmem_budget, min_blocks):
    """Largest divisor of U whose double-buffered VMEM footprint (weights AND
    activations) fits the per-generation budget, preferring >= min_blocks grid
    blocks (and an even block count on dual-TC parts)."""
    dw = max(dh, du)

    def footprint(ub):
        blocks = [
            ((B, din), 4), ((1, din), 4), ((1, din), 4),       # x, gamma, beta
            ((ub, B, dh), 4),                                  # hidden in
            ((din, ub * dh), wbytes),                          # w1 block
            ((2, ub, dh, 3 * dh), wbytes),                     # fused GRU weights
            ((ub, dh, du), wbytes),                            # w2
            ((ub, 6, dw), 4),                                  # packed biases
            ((ub, B, du), 4),                                  # output
            ((ub, B, dh), 4),                                  # hidden out
        ]
        return 2 * sum(_blk_bytes(s, i) for s, i in blocks)    # double-buffered

    max_ub = min(U, _MAX_UNITS_PER_BLOCK)
    divisors = [d for d in range(1, max_ub + 1) if U % d == 0]
    fitting = [d for d in divisors if footprint(d) <= vmem_budget] or [1]
    pref = [d for d in fitting if U // d >= min_blocks] or fitting
    if min_blocks >= 4:  # dual-TC: prefer an even number of grid blocks
        pref = [d for d in pref if (U // d) % 2 == 0] or pref
    return max(pref)


# ----------------------------------------------------------------------------
# Forward wrapper.
# ----------------------------------------------------------------------------
def aggregator_region_forward(x, params, hidden, weights_dtype=jnp.bfloat16):
    """x: (B, dim_inputs) f32; hidden: (U, B, dim_hidden) f32.
    Returns (y: (B, num_units, dim_unit), new_hidden: (U, B, dim_hidden))."""
    B, din = x.shape
    U, _, dh = params["w1"].shape
    du = params["w2"].shape[-1]
    dw = max(dh, du)

    vmem_limit, vmem_budget, min_blocks = _device_config()
    ub = _choose_units_per_block(U, B, din, dh, du,
                                 jnp.dtype(weights_dtype).itemsize,
                                 vmem_budget, min_blocks)
    g = U // ub

    kp = _prepare_kernel_params(params, weights_dtype, ub)
    blk = lambda i: (i, 0, 0)

    out, h_new = pl.pallas_call(
        _aggregator_kernel,
        out_shape=(jax.ShapeDtypeStruct((U, B, du), jnp.float32),
                   jax.ShapeDtypeStruct((U, B, dh), jnp.float32)),
        grid_spec=pltpu.PrefetchScalarGridSpec(
            num_scalar_prefetch=0,
            grid=(g,),
            in_specs=[
                pl.BlockSpec((B, din), lambda i: (0, 0)),            # x (resident)
                pl.BlockSpec((1, din), lambda i: (0, 0)),            # gamma (resident)
                pl.BlockSpec((1, din), lambda i: (0, 0)),            # beta (resident)
                pl.BlockSpec((ub, B, dh), blk),                      # hidden state
                pl.BlockSpec((None, din, ub * dh), lambda i: (i, 0, 0)),   # w1 block
                pl.BlockSpec((2, ub, dh, 3 * dh), lambda i: (0, i, 0, 0)), # fused GRU weights
                pl.BlockSpec((ub, dh, du), blk),                     # w2
                pl.BlockSpec((ub, 6, dw), blk),                      # packed biases (+b2)
            ],
            out_specs=(
                pl.BlockSpec((ub, B, du), blk),                      # output (unit-major)
                pl.BlockSpec((ub, B, dh), blk),                      # new hidden
            ),
        ),
        # If profiling shows exposed weight DMA, add pipeline_mode=pl.Buffered(3) on the
        # weight BlockSpecs; int8/fp8 weight streaming is a further bandwidth lever.
        compiler_params=pltpu.CompilerParams(
            dimension_semantics=("parallel",),
            vmem_limit_bytes=int(vmem_limit)),
    )(x, params["gamma"], params["beta"], hidden,
      kp["w1"], kp["wgru"], kp["w2"], kp["bias"])

    y = jnp.transpose(out, (1, 0, 2))                                # (B, U, du), one XLA op
    return y, h_new


# ----------------------------------------------------------------------------
# Pure-JAX reference of the PyTorch module forward (single step).
# ----------------------------------------------------------------------------
def _reference_forward(x, params, hidden):
    B, din = x.shape
    U, _, dh = params["w1"].shape
    mu = jnp.mean(x, axis=-1, keepdims=True)
    var = jnp.mean((x - mu) ** 2, axis=-1, keepdims=True)
    xn = (x - mu) / jnp.sqrt(var + LN_EPS) * params["gamma"][0] + params["beta"][0]
    xe = jnp.broadcast_to(xn[:, None, :], (B, U, din))
    h_lin = jnp.einsum("bud,udh->buh", xe, params["w1"]) + params["b1"][:, 0][None]
    h0 = jnp.transpose(hidden, (1, 0, 2))                            # (B, U, Dh)
    gi = jnp.einsum("buh,uhk->buk", h_lin, params["wi"]) + params["bi"][:, 0][None]
    gh = jnp.einsum("buh,uhk->buk", h0, params["wh"]) + params["bh"][:, 0][None]
    r = jax.nn.sigmoid(gi[..., :dh] + gh[..., :dh])
    z = jax.nn.sigmoid(gi[..., dh:2 * dh] + gh[..., dh:2 * dh])
    n = jnp.tanh(gi[..., 2 * dh:] + r * gh[..., 2 * dh:])
    h = (1 - z) * n + z * h0
    y = jnp.einsum("buh,uhd->bud", h, params["w2"]) + params["b2"][:, 0][None]
    return y, jnp.transpose(h, (1, 0, 2))


def init_params(key, num_units, dim_inputs, dim_hidden, dim_unit):
    ks = jax.random.split(key, 8)
    s = 0.1
    return {
        "gamma": jnp.ones((1, dim_inputs), jnp.float32),
        "beta": jnp.zeros((1, dim_inputs), jnp.float32),
        "w1": s * jax.random.normal(ks[0], (num_units, dim_inputs, dim_hidden), jnp.float32),
        "b1": s * jax.random.normal(ks[1], (num_units, 1, dim_hidden), jnp.float32),
        "wi": s * jax.random.normal(ks[2], (num_units, dim_hidden, 3 * dim_hidden), jnp.float32),
        "wh": s * jax.random.normal(ks[3], (num_units, dim_hidden, 3 * dim_hidden), jnp.float32),
        "bi": s * jax.random.normal(ks[4], (num_units, 1, 3 * dim_hidden), jnp.float32),
        "bh": s * jax.random.normal(ks[5], (num_units, 1, 3 * dim_hidden), jnp.float32),
        "w2": s * jax.random.normal(ks[6], (num_units, dim_hidden, dim_unit), jnp.float32),
        "b2": s * jax.random.normal(ks[7], (num_units, 1, dim_unit), jnp.float32),
    }


if __name__ == "__main__":
    num_units, dim_unit = 4, 8
    dim_inputs, dim_hidden = 32, 32
    batch = 8
    # max_bptt affects only truncated-BPTT detach; no forward-pass effect.

    key = jax.random.PRNGKey(0)
    k_x, k_p = jax.random.split(key)
    x = jax.random.normal(k_x, (batch, dim_inputs), jnp.float32)
    params = init_params(k_p, num_units, dim_inputs, dim_hidden, dim_unit)
    hidden = jnp.zeros((num_units, batch, dim_hidden), jnp.float32)  # state after reset()

    y_ref, h_ref = _reference_forward(x, params, hidden)

    # Exact-path check with f32 weights.
    y32, h32 = aggregator_region_forward(x, params, hidden, weights_dtype=jnp.float32)
    jax.block_until_ready((y32, h32))
    assert y32.shape == (batch, num_units, dim_unit)
    assert h32.shape == (num_units, batch, dim_hidden)
    assert jnp.allclose(y32, y_ref, atol=1e-5, rtol=1e-5)
    assert jnp.allclose(h32, h_ref, atol=1e-5, rtol=1e-5)

    # Fast (default) path: bf16 weight stream, f32 accumulation / elementwise math.
    y16, h16 = aggregator_region_forward(x, params, hidden)
    jax.block_until_ready((y16, h16))
    assert jnp.allclose(y16, y_ref, atol=5e-2, rtol=5e-2)
    assert jnp.allclose(h16, h_ref, atol=5e-2, rtol=5e-2)

    print("KERNEL_OK")
</pallas_src>

<mosaic_0001>
module attributes {stable_mosaic.version = 11 : i64} {
  func.func @_aggregator_kernel(%arg0: i32, %arg1: memref<8x32xf32, #tpu.memory_space<vmem>>, %arg2: memref<1x32xf32, #tpu.memory_space<vmem>>, %arg3: memref<1x32xf32, #tpu.memory_space<vmem>>, %arg4: memref<2x8x32xf32, #tpu.memory_space<vmem>>, %arg5: memref<1x32x64xf32, #tpu.memory_space<vmem>>, %arg6: memref<2x2x32x96xf32, #tpu.memory_space<vmem>>, %arg7: memref<2x32x8xf32, #tpu.memory_space<vmem>>, %arg8: memref<2x6x32xf32, #tpu.memory_space<vmem>>, %arg9: memref<2x8x8xf32, #tpu.memory_space<vmem>>, %arg10: memref<2x8x32xf32, #tpu.memory_space<vmem>>) attributes {dimension_semantics = [#tpu.dimension_semantics<parallel>], iteration_bounds = array<i64: 2>, scalar_prefetch = 0 : i64, scratch_operands = 0 : i64, tpu.core_type = #tpu.core_type<tc>, window_params = [{pipeline_mode = #tpu.pipeline_mode<synchronous>, transform_indices = @transform_0, window_bounds = array<i64: 8, 32>}, {pipeline_mode = #tpu.pipeline_mode<synchronous>, transform_indices = @transform_1, window_bounds = array<i64: 1, 32>}, {pipeline_mode = #tpu.pipeline_mode<synchronous>, transform_indices = @transform_2, window_bounds = array<i64: 1, 32>}, {transform_indices = @transform_3, window_bounds = array<i64: 2, 8, 32>}, {transform_indices = @transform_4, window_bounds = array<i64: 1, 32, 64>}, {transform_indices = @transform_5, window_bounds = array<i64: 2, 2, 32, 96>}, {transform_indices = @transform_6, window_bounds = array<i64: 2, 32, 8>}, {transform_indices = @transform_7, window_bounds = array<i64: 2, 6, 32>}, {transform_indices = @transform_8, window_bounds = array<i64: 2, 8, 8>}, {transform_indices = @transform_9, window_bounds = array<i64: 2, 8, 32>}]} {
    %c0 = arith.constant 0 : index
    %c0_0 = arith.constant 0 : index
    %0 = vector.load %arg1[%c0, %c0_0] : memref<8x32xf32, #tpu.memory_space<vmem>>, vector<8x32xf32>
    %cst = arith.constant dense<0.000000e+00> : vector<8xf32>
    %1 = vector.multi_reduction <add>, %0, %cst [1] : vector<8x32xf32> to vector<8xf32>
    %2 = vector.shape_cast %1 : vector<8xf32> to vector<8x1xf32>
    %cst_1 = arith.constant 3.200000e+01 : f32
    %3 = vector.broadcast %cst_1 : f32 to vector<8x1xf32>
    %4 = arith.divf %2, %3 : vector<8x1xf32>
    %5 = vector.broadcast %4 : vector<8x1xf32> to vector<8x32xf32>
    %6 = arith.subf %0, %5 : vector<8x32xf32>
    %7 = arith.mulf %6, %6 : vector<8x32xf32>
    %cst_2 = arith.constant dense<0.000000e+00> : vector<8xf32>
    %8 = vector.multi_reduction <add>, %7, %cst_2 [1] : vector<8x32xf32> to vector<8xf32>
    %9 = vector.shape_cast %8 : vector<8xf32> to vector<8x1xf32>
    %cst_3 = arith.constant 3.200000e+01 : f32
    %10 = vector.broadcast %cst_3 : f32 to vector<8x1xf32>
    %11 = arith.divf %9, %10 : vector<8x1xf32>
    %cst_4 = arith.constant 9.99999974E-6 : f32
    %12 = vector.broadcast %cst_4 : f32 to vector<8x1xf32>
    %13 = arith.addf %11, %12 : vector<8x1xf32>
    %14 = math.rsqrt %13 : vector<8x1xf32>
    %15 = vector.broadcast %14 : vector<8x1xf32> to vector<8x32xf32>
    %16 = arith.mulf %6, %15 : vector<8x32xf32>
    %c0_5 = arith.constant 0 : index
    %c0_6 = arith.constant 0 : index
    %17 = vector.load %arg2[%c0_5, %c0_6] : memref<1x32xf32, #tpu.memory_space<vmem>>, vector<1x32xf32>
    %18 = vector.broadcast %17 : vector<1x32xf32> to vector<8x32xf32>
    %19 = arith.mulf %16, %18 : vector<8x32xf32>
    %c0_7 = arith.constant 0 : index
    %c0_8 = arith.constant 0 : index
    %20 = vector.load %arg3[%c0_7, %c0_8] : memref<1x32xf32, #tpu.memory_space<vmem>>, vector<1x32xf32>
    %21 = vector.broadcast %20 : vector<1x32xf32> to vector<8x32xf32>
    %22 = arith.addf %19, %21 : vector<8x32xf32>
    %c0_9 = arith.constant 0 : index
    %c0_10 = arith.constant 0 : index
    %c0_11 = arith.constant 0 : index
    %23 = vector.load %arg8[%c0_9, %c0_10, %c0_11] : memref<2x6x32xf32, #tpu.memory_space<vmem>>, vector<2x6x32xf32>
    %24 = vector.extract_strided_slice %23 {offsets = [0, 0, 0], sizes = [2, 1, 32], strides = [1, 1, 1]} : vector<2x6x32xf32> to vector<2x1x32xf32>
    %25 = vector.extract_strided_slice %23 {offsets = [0, 1, 0], sizes = [2, 1, 32], strides = [1, 1, 1]} : vector<2x6x32xf32> to vector<2x1x32xf32>
    %26 = vector.extract_strided_slice %23 {offsets = [0, 2, 0], sizes = [2, 1, 32], strides = [1, 1, 1]} : vector<2x6x32xf32> to vector<2x1x32xf32>
    %27 = vector.extract_strided_slice %23 {offsets = [0, 3, 0], sizes = [2, 1, 32], strides = [1, 1, 1]} : vector<2x6x32xf32> to vector<2x1x32xf32>
    %28 = vector.extract_strided_slice %23 {offsets = [0, 4, 0], sizes = [2, 1, 32], strides = [1, 1, 1]} : vector<2x6x32xf32> to vector<2x1x32xf32>
    %29 = vector.extract_strided_slice %23 {offsets = [0, 5, 0], sizes = [2, 1, 8], strides = [1, 1, 1]} : vector<2x6x32xf32> to vector<2x1x8xf32>
    %c0_12 = arith.constant 0 : index
    %c0_13 = arith.constant 0 : index
    %c0_14 = arith.constant 0 : index
    %30 = vector.load %arg5[%c0_12, %c0_13, %c0_14] : memref<1x32x64xf32, #tpu.memory_space<vmem>>, vector<1x32x64xf32>
    %31 = vector.shape_cast %30 : vector<1x32x64xf32> to vector<32x64xf32>
    %cst_15 = arith.constant dense<0.000000e+00> : vector<8x64xf32>
    %32 = tpu.matmul %22, %31, %cst_15 {dimension_numbers = #tpu.dot_dimension_numbers<[1], [0], [0], [1], [0, 0, 1, 1], [], []>} : vector<8x32xf32>, vector<32x64xf32>, vector<8x64xf32> -> vector<8x64xf32>
    %33 = vector.extract_strided_slice %32 {offsets = [0, 0], sizes = [8, 32], strides = [1, 1]} : vector<8x64xf32> to vector<8x32xf32>
    %34 = vector.extract_strided_slice %32 {offsets = [0, 32], sizes = [8, 32], strides = [1, 1]} : vector<8x64xf32> to vector<8x32xf32>
    %35 = vector.shape_cast %33 : vector<8x32xf32> to vector<1x8x32xf32>
    %36 = vector.shape_cast %34 : vector<8x32xf32> to vector<1x8x32xf32>
    %37 = tpu.concatenate %35, %36 in 0 : vector<1x8x32xf32>, vector<1x8x32xf32> -> vector<2x8x32xf32>
    %38 = vector.broadcast %24 : vector<2x1x32xf32> to vector<2x8x32xf32>
    %39 = arith.addf %37, %38 : vector<2x8x32xf32>
    %c0_16 = arith.constant 0 : index
    %c0_17 = arith.constant 0 : index
    %c0_18 = arith.constant 0 : index
    %c0_19 = arith.constant 0 : index
    %40 = vector.load %arg6[%c0_16, %c0_17, %c0_18, %c0_19] : memref<2x2x32x96xf32, #tpu.memory_space<vmem>>, vector<1x2x32x96xf32>
    %41 = vector.shape_cast %40 : vector<1x2x32x96xf32> to vector<2x32x96xf32>
    %c1 = arith.constant 1 : index
    %c0_20 = arith.constant 0 : index
    %c0_21 = arith.constant 0 : index
    %c0_22 = arith.constant 0 : index
    %42 = vector.load %arg6[%c1, %c0_20, %c0_21, %c0_22] : memref<2x2x32x96xf32, #tpu.memory_space<vmem>>, vector<1x2x32x96xf32>
    %43 = vector.shape_cast %42 : vector<1x2x32x96xf32> to vector<2x32x96xf32>
    %c0_23 = arith.constant 0 : index
    %c0_24 = arith.constant 0 : index
    %c0_25 = arith.constant 0 : index
    %44 = vector.load %arg4[%c0_23, %c0_24, %c0_25] : memref<2x8x32xf32, #tpu.memory_space<vmem>>, vector<2x8x32xf32>
    %cst_26 = arith.constant dense<0.000000e+00> : vector<2x8x96xf32>
    %45 = tpu.matmul %39, %41, %cst_26 {dimension_numbers = #tpu.dot_dimension_numbers<[2], [1], [1], [2], [0, 0, 0, 1, 1, 2], [0], [0]>} : vector<2x8x32xf32>, vector<2x32x96xf32>, vector<2x8x96xf32> -> vector<2x8x96xf32>
    %cst_27 = arith.constant dense<0.000000e+00> : vector<2x8x96xf32>
    %46 = tpu.matmul %44, %43, %cst_27 {dimension_numbers = #tpu.dot_dimension_numbers<[2], [1], [1], [2], [0, 0, 0, 1, 1, 2], [0], [0]>} : vector<2x8x32xf32>, vector<2x32x96xf32>, vector<2x8x96xf32> -> vector<2x8x96xf32>
    %47 = vector.extract_strided_slice %45 {offsets = [0, 0, 0], sizes = [2, 8, 32], strides = [1, 1, 1]} : vector<2x8x96xf32> to vector<2x8x32xf32>
    %48 = vector.extract_strided_slice %46 {offsets = [0, 0, 0], sizes = [2, 8, 32], strides = [1, 1, 1]} : vector<2x8x96xf32> to vector<2x8x32xf32>
    %49 = arith.addf %47, %48 : vector<2x8x32xf32>
    %50 = vector.broadcast %25 : vector<2x1x32xf32> to vector<2x8x32xf32>
    %51 = arith.addf %49, %50 : vector<2x8x32xf32>
    %52 = arith.negf %51 : vector<2x8x32xf32>
    %53 = math.exp %52 : vector<2x8x32xf32>
    %cst_28 = arith.constant 1.000000e+00 : f32
    %54 = vector.broadcast %cst_28 : f32 to vector<2x8x32xf32>
    %55 = arith.addf %54, %53 : vector<2x8x32xf32>
    %56 = arith.divf %54, %55 : vector<2x8x32xf32>
    %57 = vector.extract_strided_slice %45 {offsets = [0, 0, 32], sizes = [2, 8, 32], strides = [1, 1, 1]} : vector<2x8x96xf32> to vector<2x8x32xf32>
    %58 = vector.extract_strided_slice %46 {offsets = [0, 0, 32], sizes = [2, 8, 32], strides = [1, 1, 1]} : vector<2x8x96xf32> to vector<2x8x32xf32>
    %59 = arith.addf %57, %58 : vector<2x8x32xf32>
    %60 = vector.broadcast %26 : vector<2x1x32xf32> to vector<2x8x32xf32>
    %61 = arith.addf %59, %60 : vector<2x8x32xf32>
    %62 = arith.negf %61 : vector<2x8x32xf32>
    %63 = math.exp %62 : vector<2x8x32xf32>
    %cst_29 = arith.constant 1.000000e+00 : f32
    %64 = vector.broadcast %cst_29 : f32 to vector<2x8x32xf32>
    %65 = arith.addf %64, %63 : vector<2x8x32xf32>
    %66 = arith.divf %64, %65 : vector<2x8x32xf32>
    %67 = vector.extract_strided_slice %45 {offsets = [0, 0, 64], sizes = [2, 8, 32], strides = [1, 1, 1]} : vector<2x8x96xf32> to vector<2x8x32xf32>
    %68 = vector.broadcast %27 : vector<2x1x32xf32> to vector<2x8x32xf32>
    %69 = arith.addf %67, %68 : vector<2x8x32xf32>
    %70 = vector.extract_strided_slice %46 {offsets = [0, 0, 64], sizes = [2, 8, 32], strides = [1, 1, 1]} : vector<2x8x96xf32> to vector<2x8x32xf32>
    %71 = vector.broadcast %28 : vector<2x1x32xf32> to vector<2x8x32xf32>
    %72 = arith.addf %70, %71 : vector<2x8x32xf32>
    %73 = arith.mulf %56, %72 : vector<2x8x32xf32>
    %74 = arith.addf %69, %73 : vector<2x8x32xf32>
    %75 = math.tanh %74 : vector<2x8x32xf32>
    %cst_30 = arith.constant 1.000000e+00 : f32
    %76 = vector.broadcast %cst_30 : f32 to vector<2x8x32xf32>
    %77 = arith.subf %76, %66 : vector<2x8x32xf32>
    %78 = arith.mulf %77, %75 : vector<2x8x32xf32>
    %79 = arith.mulf %66, %44 : vector<2x8x32xf32>
    %80 = arith.addf %78, %79 : vector<2x8x32xf32>
    %c0_31 = arith.constant 0 : index
    %c0_32 = arith.constant 0 : index
    %c0_33 = arith.constant 0 : index
    %81 = vector.load %arg7[%c0_31, %c0_32, %c0_33] : memref<2x32x8xf32, #tpu.memory_space<vmem>>, vector<2x32x8xf32>
    %cst_34 = arith.constant dense<0.000000e+00> : vector<2x8x8xf32>
    %82 = tpu.matmul %80, %81, %cst_34 {dimension_numbers = #tpu.dot_dimension_numbers<[2], [1], [1], [2], [0, 0, 0, 1, 1, 2], [0], [0]>} : vector<2x8x32xf32>, vector<2x32x8xf32>, vector<2x8x8xf32> -> vector<2x8x8xf32>
    %83 = vector.broadcast %29 : vector<2x1x8xf32> to vector<2x8x8xf32>
    %84 = arith.addf %82, %83 : vector<2x8x8xf32>
    %c0_35 = arith.constant 0 : index
    %c0_36 = arith.constant 0 : index
    %c0_37 = arith.constant 0 : index
    %85 = vector.load %arg10[%c0_35, %c0_36, %c0_37] : memref<2x8x32xf32, #tpu.memory_space<vmem>>, vector<2x8x32xf32>
    tpu.vector_store %arg10[%c0_35, %c0_36, %c0_37], %80 {strides = array<i32>} : memref<2x8x32xf32, #tpu.memory_space<vmem>>, vector<2x8x32xf32>,
    %c0_38 = arith.constant 0 : index
    %c0_39 = arith.constant 0 : index
    %c0_40 = arith.constant 0 : index
    %86 = vector.load %arg9[%c0_38, %c0_39, %c0_40] : memref<2x8x8xf32, #tpu.memory_space<vmem>>, vector<2x8x8xf32>
    tpu.vector_store %arg9[%c0_38, %c0_39, %c0_40], %84 {strides = array<i32>} : memref<2x8x8xf32, #tpu.memory_space<vmem>>, vector<2x8x8xf32>,
    return
  }
  func.func @transform_0(%arg0: i32) -> (i32, i32) {
    %c0_i32 = arith.constant 0 : i32
    %c0_i32_0 = arith.constant 0 : i32
    %c0_i32_1 = arith.constant 0 : i32
    return %c0_i32, %c0_i32_0 : i32, i32
  }
  func.func @transform_1(%arg0: i32) -> (i32, i32) {
    %c0_i32 = arith.constant 0 : i32
    %c0_i32_0 = arith.constant 0 : i32
    %c0_i32_1 = arith.constant 0 : i32
    return %c0_i32, %c0_i32_0 : i32, i32
  }
  func.func @transform_2(%arg0: i32) -> (i32, i32) {
    %c0_i32 = arith.constant 0 : i32
    %c0_i32_0 = arith.constant 0 : i32
    %c0_i32_1 = arith.constant 0 : i32
    return %c0_i32, %c0_i32_0 : i32, i32
  }
  func.func @transform_3(%arg0: i32) -> (i32, i32, i32) {
    %c0_i32 = arith.constant 0 : i32
    %c0_i32_0 = arith.constant 0 : i32
    %c0_i32_1 = arith.constant 0 : i32
    return %arg0, %c0_i32, %c0_i32_0 : i32, i32, i32
  }
  func.func @transform_4(%arg0: i32) -> (i32, i32, i32) {
    %c0_i32 = arith.constant 0 : i32
    %c0_i32_0 = arith.constant 0 : i32
    %c0_i32_1 = arith.constant 0 : i32
    return %arg0, %c0_i32, %c0_i32_0 : i32, i32, i32
  }
  func.func @transform_5(%arg0: i32) -> (i32, i32, i32, i32) {
    %c0_i32 = arith.constant 0 : i32
    %c0_i32_0 = arith.constant 0 : i32
    %c0_i32_1 = arith.constant 0 : i32
    %c0_i32_2 = arith.constant 0 : i32
    return %c0_i32, %arg0, %c0_i32_0, %c0_i32_1 : i32, i32, i32, i32
  }
  func.func @transform_6(%arg0: i32) -> (i32, i32, i32) {
    %c0_i32 = arith.constant 0 : i32
    %c0_i32_0 = arith.constant 0 : i32
    %c0_i32_1 = arith.constant 0 : i32
    return %arg0, %c0_i32, %c0_i32_0 : i32, i32, i32
  }
  func.func @transform_7(%arg0: i32) -> (i32, i32, i32) {
    %c0_i32 = arith.constant 0 : i32
    %c0_i32_0 = arith.constant 0 : i32
    %c0_i32_1 = arith.constant 0 : i32
    return %arg0, %c0_i32, %c0_i32_0 : i32, i32, i32
  }
  func.func @transform_8(%arg0: i32) -> (i32, i32, i32) {
    %c0_i32 = arith.constant 0 : i32
    %c0_i32_0 = arith.constant 0 : i32
    %c0_i32_1 = arith.constant 0 : i32
    return %arg0, %c0_i32, %c0_i32_0 : i32, i32, i32
  }
  func.func @transform_9(%arg0: i32) -> (i32, i32, i32) {
    %c0_i32 = arith.constant 0 : i32
    %c0_i32_0 = arith.constant 0 : i32
    %c0_i32_1 = arith.constant 0 : i32
    return %arg0, %c0_i32, %c0_i32_0 : i32, i32, i32
  }
}

</mosaic_0001>

<llo_original>
// kernel: tpu_custom_call.1
$region0: #{tpu_custom_call.1}
  #allocation0 [shape = 'u32[]', space=smem, size = 0x4, offset = 0x4, fixed_abs, tag = 'smem constant byte address 0x4 - core index']
  #allocation1 [shape = 'u32[144,128]{1,0:T(1,128)}', space=vmem, size = 0x12000, scoped, tag = 'internal scratch']
  #allocation8 [shape = 's32[]', space=sflag, size = 0x4, offset = 0, fixed_abs, tag = 'sflag constant byte address 0x0 - dummy sync flag']
  %s0 = inlined_call_operand.vmem [shape: f32[8,32], index: 0, kind: input, shape index: {}]
  %s1 = inlined_call_operand.vmem [shape: f32[1,32], index: 1, kind: input, shape index: {}]
  %s2 = inlined_call_operand.vmem [shape: f32[1,32], index: 2, kind: input, shape index: {}]
  %s3 = inlined_call_operand.vmem [shape: f32[4,8,32], index: 3, kind: input, shape index: {}]
  %s4 = inlined_call_operand.vmem [shape: f32[2,32,64], index: 4, kind: input, shape index: {}]
  %s5 = inlined_call_operand.hbm [shape: f32[2,4,32,96], index: 5, kind: input, shape index: {}]
  %s6 = inlined_call_operand.vmem [shape: f32[4,32,8], index: 6, kind: input, shape index: {}]
  %s7 = inlined_call_operand.vmem [shape: f32[4,6,32], index: 7, kind: input, shape index: {}]
  %s8 = inlined_call_operand.hbm [shape: f32[4,8,8], index: 8, kind: output, shape index: {0}]
  %s9 = inlined_call_operand.hbm [shape: f32[4,8,32], index: 9, kind: output, shape index: {1}]
  %10 = xla_tuple %s8, %s9
  %s11 = sld [smem:[#allocation0]]
  $region77: #{tpu_custom_call.1} parent=0
    _
  %s13 = ssub.s32 1, %s11
  %s14 = scalar_select 0, %s13, %s11
  $region1: #{tpu_custom_call.1} parent=0
    #allocation2 [shape = 'u8[131072]{0}', space=vmem, size = 0x20000, scoped, tag = 'input window, operand 5']
    #allocation3 [shape = 's32[2]{0}', space=sflag, size = 0x8, scoped, tag = 'scoped memory for tpu_custom_call.1']
    #allocation4 [shape = 's32[2]{0}', space=sflag, size = 0x8, scoped, tag = 'scoped memory for tpu_custom_call.1']
    #allocation5 [shape = 'u8[16384]{0}', space=vmem, size = 0x4000, scoped, tag = 'output window, operand 0']
    #allocation6 [shape = 'u8[16384]{0}', space=vmem, size = 0x4000, scoped, tag = 'output window, operand 1']
    #allocation7 [shape = 's32[2]{0}', space=sflag, size = 0x8, scoped, tag = 'scoped memory for tpu_custom_call.1']
    %15 = vsyncpa [#allocation3], 0
    %s16 = scalar_lea.sflag [#allocation3], 1
    %17 = vsyncpa %s16, 0
    %18 = vsyncpa [#allocation4], 0
    %s19 = scalar_lea.sflag [#allocation4], 1
    %20 = vsyncpa %s19, 0
    %21 = vsyncpa [#allocation7], 0
    %s22 = scalar_lea.sflag [#allocation7], 1
    %23 = vsyncpa %s22, 0
    loop: start=0, step=1, limit=4
    $region2: #{tpu_custom_call.1} parent=1 // loop_pre_header
      _
    $region3: #{tpu_custom_call.1} parent=1 // loop_header
      %s25 = sphi 0, %s29
      %p26 = scmp.ge.s32.totalorder %s25, 4
      %s33 = sphi 0, %s33
      %s35 = sphi 0, %s33
      %s36 = sphi 0, %s35
      %s50 = sphi 0, %s36
      %s54 = sphi 0, %s54
      %s56 = sphi 0, %s54
      %s57 = sphi 0, %s56
      %s71 = sphi 0, %s57
      %s75 = sphi 0, %s75
      %s77 = sphi 0, %s75
      %s78 = sphi 0, %s77
      %s92 = sphi 0, %s78
      %s98 = sphi 0, %s100
      %s101 = sphi 0, %s98
      %s102 = sphi 0, %s101
      %s118 = sphi 0, %s102
      %s124 = sphi 0, %s126
      %s127 = sphi 0, %s124
      %s128 = sphi 0, %s127
      %s144 = sphi 0, %s128
      %s150 = sphi 0, %s152
      %s153 = sphi 0, %s150
      %s154 = sphi 0, %s153
      %s170 = sphi 0, %s154
      %s176 = sphi 0, %s178
      %s179 = sphi 0, %s176
      %s180 = sphi 0, %s179
      %s196 = sphi 0, %s180
      %s202 = sphi 0, %s204
      %s205 = sphi 0, %s202
      %s206 = sphi 0, %s205
      %s222 = sphi 0, %s206
      %s228 = sphi 0, %s230
      %s231 = sphi 0, %s228
      %s232 = sphi 0, %s231
      %s248 = sphi 0, %s232
      %s254 = sphi 0, %s256
      %s257 = sphi 0, %s254
      %s258 = sphi 0, %s257
      %s274 = sphi 0, %s258
    $region4: #{tpu_custom_call.1} parent=1 // loop_header_branch
      %28 = sbr.rel (%p26) target = $region8
    $region5: #{tpu_custom_call.1} parent=1 // loop_body
      %s30 = ssub.s32 %s25, 1
      %s31 = ssub.s32 %s25, 2
      %s32 = sadd.s32 %s25, 1
      %s34 = sadd.s32 %s33, 1
      %p37 = scmp.eq.s32.totalorder %s25, 1
      %p38 = scmp.ne.s32.totalorder %s33, %s35
      %p39 = scmp.eq.s32.totalorder %s25, 0
      %p40 = por %p38, %p39
      %p41 = scmp.ne.s32.totalorder %s33, %s35
      %p42 = scmp.eq.s32.totalorder %s30, 1
      %p43 = por %p41, %p42
      %p44 = scmp.ne.s32.totalorder %s35, %s36
      %p45 = scmp.eq.s32.totalorder %s30, 0
      %p46 = por %p44, %p45
      %p47 = scmp.ne.s32.totalorder %s35, %s36
      %p48 = scmp.eq.s32.totalorder %s31, 1
      %p49 = por %p47, %p48
      %p51 = scmp.ne.s32.totalorder %s36, %s50
      %p52 = scmp.eq.s32.totalorder %s31, 0
      %p53 = por %p51, %p52
      %s55 = sadd.s32 %s54, 1
      %p58 = scmp.eq.s32.totalorder %s25, 1
      %p59 = scmp.ne.s32.totalorder %s54, %s56
      %p60 = scmp.eq.s32.totalorder %s25, 0
      %p61 = por %p59, %p60
      %p62 = scmp.ne.s32.totalorder %s54, %s56
      %p63 = scmp.eq.s32.totalorder %s30, 1
      %p64 = por %p62, %p63
      %p65 = scmp.ne.s32.totalorder %s56, %s57
      %p66 = scmp.eq.s32.totalorder %s30, 0
      %p67 = por %p65, %p66
      %p68 = scmp.ne.s32.totalorder %s56, %s57
      %p69 = scmp.eq.s32.totalorder %s31, 1
      %p70 = por %p68, %p69
      %p72 = scmp.ne.s32.totalorder %s57, %s71
      %p73 = scmp.eq.s32.totalorder %s31, 0
      %p74 = por %p72, %p73
      %s76 = sadd.s32 %s75, 1
      %p79 = scmp.eq.s32.totalorder %s25, 1
      %p80 = scmp.ne.s32.totalorder %s75, %s77
      %p81 = scmp.eq.s32.totalorder %s25, 0
      %p82 = por %p80, %p81
      %p83 = scmp.ne.s32.totalorder %s75, %s77
      %p84 = scmp.eq.s32.totalorder %s30, 1
      %p85 = por %p83, %p84
      %p86 = scmp.ne.s32.totalorder %s77, %s78
      %p87 = scmp.eq.s32.totalorder %s30, 0
      %p88 = por %p86, %p87
      %p89 = scmp.ne.s32.totalorder %s77, %s78
      %p90 = scmp.eq.s32.totalorder %s31, 1
      %p91 = por %p89, %p90
      %p93 = scmp.ne.s32.totalorder %s78, %s92
      %p94 = scmp.eq.s32.totalorder %s31, 0
      %p95 = por %p93, %p94
      %s96 = ssub.s32 %s25, %s32
      %p97 = scmp.eq.s32.totalorder %s96, 0
      %s99 = sadd.s32 %s98, 1
      %s100 = scalar_select %p97, %s98, %s99
      %p103 = pneg %p97
      %p104 = scmp.eq.s32.totalorder %s25, 1
      %p105 = por %p103, %p104
      %p106 = scmp.ne.s32.totalorder %s98, %s101
      %p107 = scmp.eq.s32.totalorder %s25, 0
      %p108 = por %p106, %p107
      %p109 = scmp.ne.s32.totalorder %s98, %s101
      %p110 = scmp.eq.s32.totalorder %s30, 1
      %p111 = por %p109, %p110
      %p112 = scmp.ne.s32.totalorder %s101, %s102
      %p113 = scmp.eq.s32.totalorder %s30, 0
      %p114 = por %p112, %p113
      %p115 = scmp.ne.s32.totalorder %s101, %s102
      %p116 = scmp.eq.s32.totalorder %s31, 1
      %p117 = por %p115, %p116
      %p119 = scmp.ne.s32.totalorder %s102, %s118
      %p120 = scmp.eq.s32.totalorder %s31, 0
      %p121 = por %p119, %p120
      %s122 = ssub.s32 %s25, %s32
      %p123 = scmp.eq.s32.totalorder %s122, 0
      %s125 = sadd.s32 %s124, 1
      %s126 = scalar_select %p123, %s124, %s125
      %p129 = pneg %p123
      %p130 = scmp.eq.s32.totalorder %s25, 1
      %p131 = por %p129, %p130
      %p132 = scmp.ne.s32.totalorder %s124, %s127
      %p133 = scmp.eq.s32.totalorder %s25, 0
      %p134 = por %p132, %p133
      %p135 = scmp.ne.s32.totalorder %s124, %s127
      %p136 = scmp.eq.s32.totalorder %s30, 1
      %p137 = por %p135, %p136
      %p138 = scmp.ne.s32.totalorder %s127, %s128
      %p139 = scmp.eq.s32.totalorder %s30, 0
      %p140 = por %p138, %p139
      %p141 = scmp.ne.s32.totalorder %s127, %s128
      %p142 = scmp.eq.s32.totalorder %s31, 1
      %p143 = por %p141, %p142
      %p145 = scmp.ne.s32.totalorder %s128, %s144
      %p146 = scmp.eq.s32.totalorder %s31, 0
      %p147 = por %p145, %p146
      %s148 = ssub.s32 %s25, %s32
      %p149 = scmp.eq.s32.totalorder %s148, 0
      %s151 = sadd.s32 %s150, 1
      %s152 = scalar_select %p149, %s150, %s151
      %p155 = pneg %p149
      %p156 = scmp.eq.s32.totalorder %s25, 1
      %p157 = por %p155, %p156
      %p158 = scmp.ne.s32.totalorder %s150, %s153
      %p159 = scmp.eq.s32.totalorder %s25, 0
      %p160 = por %p158, %p159
      %p161 = scmp.ne.s32.totalorder %s150, %s153
      %p162 = scmp.eq.s32.totalorder %s30, 1
      %p163 = por %p161, %p162
      %p164 = scmp.ne.s32.totalorder %s153, %s154
      %p165 = scmp.eq.s32.totalorder %s30, 0
      %p166 = por %p164, %p165
      %p167 = scmp.ne.s32.totalorder %s153, %s154
      %p168 = scmp.eq.s32.totalorder %s31, 1
      %p169 = por %p167, %p168
      %p171 = scmp.ne.s32.totalorder %s154, %s170
      %p172 = scmp.eq.s32.totalorder %s31, 0
      %p173 = por %p171, %p172
      %s174 = ssub.s32 %s25, %s32
      %p175 = scmp.eq.s32.totalorder %s174, 0
      %s177 = sadd.s32 %s176, 1
      %s178 = scalar_select %p175, %s176, %s177
      %p181 = pneg %p175
      %p182 = scmp.eq.s32.totalorder %s25, 1
      %p183 = por %p181, %p182
      %p184 = scmp.ne.s32.totalorder %s176, %s179
      %p185 = scmp.eq.s32.totalorder %s25, 0
      %p186 = por %p184, %p185
      %p187 = scmp.ne.s32.totalorder %s176, %s179
      %p188 = scmp.eq.s32.totalorder %s30, 1
      %p189 = por %p187, %p188
      %p190 = scmp.ne.s32.totalorder %s179, %s180
      %p191 = scmp.eq.s32.totalorder %s30, 0
      %p192 = por %p190, %p191
      %p193 = scmp.ne.s32.totalorder %s179, %s180
      %p194 = scmp.eq.s32.totalorder %s31, 1
      %p195 = por %p193, %p194
      %p197 = scmp.ne.s32.totalorder %s180, %s196
      %p198 = scmp.eq.s32.totalorder %s31, 0
      %p199 = por %p197, %p198
      %s200 = ssub.s32 %s25, %s32
      %p201 = scmp.eq.s32.totalorder %s200, 0
      %s203 = sadd.s32 %s202, 1
      %s204 = scalar_select %p201, %s202, %s203
      %p207 = pneg %p201
      %p208 = scmp.eq.s32.totalorder %s25, 1
      %p209 = por %p207, %p208
      %p210 = scmp.ne.s32.totalorder %s202, %s205
      %p211 = scmp.eq.s32.totalorder %s25, 0
      %p212 = por %p210, %p211
      %p213 = scmp.ne.s32.totalorder %s202, %s205
      %p214 = scmp.eq.s32.totalorder %s30, 1
      %p215 = por %p213, %p214
      %p216 = scmp.ne.s32.totalorder %s205, %s206
      %p217 = scmp.eq.s32.totalorder %s30, 0
      %p218 = por %p216, %p217
      %p219 = scmp.ne.s32.totalorder %s205, %s206
      %p220 = scmp.eq.s32.totalorder %s31, 1
      %p221 = por %p219, %p220
      %p223 = scmp.ne.s32.totalorder %s206, %s222
      %p224 = scmp.eq.s32.totalorder %s31, 0
      %p225 = por %p223, %p224
      %s226 = ssub.s32 %s25, %s32
      %p227 = scmp.eq.s32.totalorder %s226, 0
      %s229 = sadd.s32 %s228, 1
      %s230 = scalar_select %p227, %s228, %s229
      %p233 = pneg %p227
      %p234 = scmp.eq.s32.totalorder %s25, 1
      %p235 = por %p233, %p234
      %p236 = scmp.ne.s32.totalorder %s228, %s231
      %p237 = scmp.eq.s32.totalorder %s25, 0
      %p238 = por %p236, %p237
      %p239 = scmp.ne.s32.totalorder %s228, %s231
      %p240 = scmp.eq.s32.totalorder %s30, 1
      %p241 = por %p239, %p240
      %p242 = scmp.ne.s32.totalorder %s231, %s232
      %p243 = scmp.eq.s32.totalorder %s30, 0
      %p244 = por %p242, %p243
      %p245 = scmp.ne.s32.totalorder %s231, %s232
      %p246 = scmp.eq.s32.totalorder %s31, 1
      %p247 = por %p245, %p246
      %p249 = scmp.ne.s32.totalorder %s232, %s248
      %p250 = scmp.eq.s32.totalorder %s31, 0
      %p251 = por %p249, %p250
      %s252 = ssub.s32 %s25, %s32
      %p253 = scmp.eq.s32.totalorder %s252, 0
      %s255 = sadd.s32 %s254, 1
      %s256 = scalar_select %p253, %s254, %s255
      %p259 = pneg %p253
      %p260 = scmp.eq.s32.totalorder %s25, 1
      %p261 = por %p259, %p260
      %p262 = scmp.ne.s32.totalorder %s254, %s257
      %p263 = scmp.eq.s32.totalorder %s25, 0
      %p264 = por %p262, %p263
      %p265 = scmp.ne.s32.totalorder %s254, %s257
      %p266 = scmp.eq.s32.totalorder %s30, 1
      %p267 = por %p265, %p266
      %p268 = scmp.ne.s32.totalorder %s257, %s258
      %p269 = scmp.eq.s32.totalorder %s30, 0
      %p270 = por %p268, %p269
      %p271 = scmp.ne.s32.totalorder %s257, %s258
      %p272 = scmp.eq.s32.totalorder %s31, 1
      %p273 = por %p271, %p272
      %p275 = scmp.ne.s32.totalorder %s258, %s274
      %p276 = scmp.eq.s32.totalorder %s31, 0
      %p277 = por %p275, %p276
      %p278 = scmp.le.s32.totalorder 1, %s25
      %p279 = scmp.lt.s32.totalorder %s25, 3
      %p280 = pnand %p278, %p279
      %p281 = pneg %p280
      // Predicated region
      $region9: #{tpu_custom_call.1} parent=5 // pred_check
        _
      $region10: #{tpu_custom_call.1} parent=5 // pred_check_branch
        %283 = sbr.rel (%p280) target = $region12
      $region11: #{tpu_custom_call.1} parent=5 // pred_region
        %s284 = ssub.s32 %s25, 1
        // Predicated region
        $region13: #{tpu_custom_call.1} parent=11 // pred_check
          %p285 = pneg %p46
        $region14: #{tpu_custom_call.1} parent=11 // pred_check_branch
          %287 = sbr.rel (%p285) target = $region16
        $region15: #{tpu_custom_call.1} parent=11 // pred_region
          _
        $region16: #{tpu_custom_call.1} parent=11 // pred_fallthru
          _
        // Predicated region
        $region17: #{tpu_custom_call.1} parent=11 // pred_check
          %p288 = pneg %p67
        $region18: #{tpu_custom_call.1} parent=11 // pred_check_branch
          %290 = sbr.rel (%p288) target = $region20
        $region19: #{tpu_custom_call.1} parent=11 // pred_region
          _
        $region20: #{tpu_custom_call.1} parent=11 // pred_fallthru
          _
        // Predicated region
        $region21: #{tpu_custom_call.1} parent=11 // pred_check
          %p291 = pneg %p88
        $region22: #{tpu_custom_call.1} parent=11 // pred_check_branch
          %293 = sbr.rel (%p291) target = $region24
        $region23: #{tpu_custom_call.1} parent=11 // pred_region
          _
        $region24: #{tpu_custom_call.1} parent=11 // pred_fallthru
          _
      $region12: #{tpu_custom_call.1} parent=5 // pred_fallthru
        _
      %p294 = scmp.lt.s32.totalorder %s25, 2
      // Predicated region
      $region25: #{tpu_custom_call.1} parent=5 // pred_check
        %p295 = pneg %p294
      $region26: #{tpu_custom_call.1} parent=5 // pred_check_branch
        %297 = sbr.rel (%p295) target = $region28
      $region27: #{tpu_custom_call.1} parent=5 // pred_region
        // Predicated region
        $region29: #{tpu_custom_call.1} parent=27 // pred_check
          %p298 = pneg %p108
        $region30: #{tpu_custom_call.1} parent=27 // pred_check_branch
          %300 = sbr.rel (%p298) target = $region32
        $region31: #{tpu_custom_call.1} parent=27 // pred_region
          %s301 = smul.u32 2, %s25
          %p302 = scmp.lt.s32.totalorder %s301, 3
          %s303 = scalar_select %p302, %s301, 3
          %s304 = smul.addr %s303, 8
          %s305 = scalar_lea.vmem %s3, %s304
          %s306 = smul.u32 2, %s25
        $region32: #{tpu_custom_call.1} parent=27 // pred_fallthru
          _
        // Predicated region
        $region33: #{tpu_custom_call.1} parent=27 // pred_check
          %p307 = pneg %p134
        $region34: #{tpu_custom_call.1} parent=27 // pred_check_branch
          %309 = sbr.rel (%p307) target = $region36
        $region35: #{tpu_custom_call.1} parent=27 // pred_region
          %p310 = scmp.lt.s32.totalorder %s25, 1
          %s311 = scalar_select %p310, %s25, 1
          %s312 = smul.addr %s311, 4
          %s313 = smul.addr %s312, 8
          %s314 = scalar_lea.vmem %s4, %s313
        $region36: #{tpu_custom_call.1} parent=27 // pred_fallthru
          _
        // Predicated region
        $region37: #{tpu_custom_call.1} parent=27 // pred_check
          %p315 = pneg %p160
        $region38: #{tpu_custom_call.1} parent=27 // pred_check_branch
          %317 = sbr.rel (%p315) target = $region40
        $region39: #{tpu_custom_call.1} parent=27 // pred_region
          #allocation9 [shape = 'u32[6]{0}', space=smem, size = 0x18, scoped, tag = 'DMA stride descriptor']
          %s318 = sand.u32 %s150, 1
          %s319 = scalar_lea.sflag [#allocation3], %s318
          %s320 = sand.u32 %s150, 1
          %s321 = smul.addr %s320, 128
          %s322 = scalar_lea.vmem [#allocation2], %s321
          %s323 = smul.u32 2, %s25
          %s325 = ssub.s32 2048, 2048
          %326 = vsyncadd %s319, %s325
          %s327 = smul.addr %s323, 4
          %s328 = smul.addr %s327, 128
          %s329 = scalar_lea.hbm %s5, %s328
          %s331 = sshll.u32 1, 14
          %s332 = sxor.u32 4294967295, %s331
          %s334 = sld [smem:[#allocation0]]
          %s335 = sadd.s32 2, %s334
          %s337 = sshll.u32 7, 26
          %s338 = sxor.u32 4294967295, %s337
          %s339 = sand.u32 0, %s338
          %s340 = sshll.u32 %s335, 26
          %s341 = sor.u32 %s339, %s340
          %s342 = sshll.u32 %s322, 4
          %s343 = int_to_ptr.vmem [resolvable:$true] %s342
          %349 = sst [smem:[#allocation9]] 2048
          %s350 = scalar_lea.smem [#allocation9], 1
          %351 = sst [smem:[%s350]] 1024
          %s352 = scalar_lea.smem [#allocation9], 2
          %353 = sst [smem:[%s352]] 8
          %s354 = scalar_lea.smem [#allocation9], 3
          %355 = sst [smem:[%s354]] 128
          %s356 = scalar_lea.smem [#allocation9], 4
          %357 = sst [smem:[%s356]] 128
          %s358 = scalar_lea.smem [#allocation9], 5
          %359 = sst [smem:[%s358]] 8
          %361 = dma.general %s329, 2048, %s343, %s319, 131072, [#allocation9], %s341, 0
        $region40: #{tpu_custom_call.1} parent=27 // pred_fallthru
          _
        // Predicated region
        $region41: #{tpu_custom_call.1} parent=27 // pred_check
          %p362 = pneg %p186
        $region42: #{tpu_custom_call.1} parent=27 // pred_check_branch
          %364 = sbr.rel (%p362) target = $region44
        $region43: #{tpu_custom_call.1} parent=27 // pred_region
          %s365 = smul.u32 2, %s25
          %p366 = scmp.lt.s32.totalorder %s365, 3
          %s367 = scalar_select %p366, %s365, 3
          %s368 = smul.addr %s367, 4
          %s369 = smul.addr %s368, 8
          %s370 = scalar_lea.vmem %s6, %s369
          %s371 = smul.u32 2, %s25
        $region44: #{tpu_custom_call.1} parent=27 // pred_fallthru
          _
        // Predicated region
        $region45: #{tpu_custom_call.1} parent=27 // pred_check
          %p372 = pneg %p212
        $region46: #{tpu_custom_call.1} parent=27 // pred_check_branch
          %374 = sbr.rel (%p372) target = $region48
        $region47: #{tpu_custom_call.1} parent=27 // pred_region
          %s375 = smul.u32 2, %s25
          %p376 = scmp.lt.s32.totalorder %s375, 3
          %s377 = scalar_select %p376, %s375, 3
          %s378 = smul.addr %s377, 8
          %s379 = scalar_lea.vmem %s7, %s378
          %s380 = smul.u32 2, %s25
        $region48: #{tpu_custom_call.1} parent=27 // pred_fallthru
          _
      $region28: #{tpu_custom_call.1} parent=5 // pred_fallthru
        _
      %p381 = scmp.le.s32.totalorder 1, %s25
      %p382 = scmp.lt.s32.totalorder %s25, 3
      %p383 = pnand %p381, %p382
      %p384 = pneg %p383
      // Predicated region
      $region49: #{tpu_custom_call.1} parent=5 // pred_check
        _
      $region50: #{tpu_custom_call.1} parent=5 // pred_check_branch
        %386 = sbr.rel (%p383) target = $region52
      $region51: #{tpu_custom_call.1} parent=5 // pred_region
        %s387 = ssub.s32 %s25, 1
        %s388 = sand.u32 %s153, 1
        %s389 = scalar_lea.sflag [#allocation3], %s388
        %s390 = sand.u32 %s153, 1
        %s391 = smul.addr %s390, 128
        %s392 = scalar_lea.vmem [#allocation2], %s391
        // Predicated region
        $region53: #{tpu_custom_call.1} parent=51 // pred_check
          %p393 = pneg %p166
        $region54: #{tpu_custom_call.1} parent=51 // pred_check_branch
          %395 = sbr.rel (%p393) target = $region56
        $region55: #{tpu_custom_call.1} parent=51 // pred_region
          %396 = dma.done %s389, 2048
        $region56: #{tpu_custom_call.1} parent=51 // pred_fallthru
          _
        %p397 = pneg %p46
        %p398 = pneg %p43
        %p399 = pneg %p67
        %p400 = pneg %p64
        %p401 = pneg %p88
        %p402 = pneg %p85
        %s403 = smul.u32 2, %s30
        %p404 = scmp.lt.s32.totalorder %s403, 3
        %s405 = scalar_select %p404, %s403, 3
        %s406 = smul.addr %s405, 8
        %s407 = scalar_lea.vmem %s3, %s406
        %p408 = pneg %p114
        %p409 = pneg %p111
        %p410 = scmp.lt.s32.totalorder %s30, 1
        %s411 = scalar_select %p410, %s30, 1
        %s412 = smul.addr %s411, 4
        %s413 = smul.addr %s412, 8
        %s414 = scalar_lea.vmem %s4, %s413
        %p415 = pneg %p140
        %p416 = pneg %p137
        %s417 = sand.u32 %s153, 1
        %s418 = scalar_lea.sflag [#allocation3], %s417
        %s419 = sand.u32 %s153, 1
        %s420 = smul.addr %s419, 128
        %s421 = scalar_lea.vmem [#allocation2], %s420
        %p422 = pneg %p166
        %p423 = pneg %p163
        %s424 = smul.u32 2, %s30
        %p425 = scmp.lt.s32.totalorder %s424, 3
        %s426 = scalar_select %p425, %s424, 3
        %s427 = smul.addr %s426, 4
        %s428 = smul.addr %s427, 8
        %s429 = scalar_lea.vmem %s6, %s428
        %p430 = pneg %p192
        %p431 = pneg %p189
        %s432 = smul.u32 2, %s30
        %p433 = scmp.lt.s32.totalorder %s432, 3
        %s434 = scalar_select %p433, %s432, 3
        %s435 = smul.addr %s434, 8
        %s436 = scalar_lea.vmem %s7, %s435
        %p437 = pneg %p218
        %p438 = pneg %p215
        %p439 = pneg %p244
        %p440 = pneg %p241
        %s441 = sand.u32 %s231, 1
        %s442 = scalar_lea.sflag [#allocation4], %s441
        %s443 = sand.u32 %s231, 1
        %s444 = smul.addr %s443, 16
        %s445 = scalar_lea.vmem [#allocation5], %s444
        %p446 = pneg %p270
        %p447 = pneg %p267
        %s448 = sand.u32 %s257, 1
        %s449 = scalar_lea.sflag [#allocation7], %s448
        %s450 = sand.u32 %s257, 1
        %s451 = smul.addr %s450, 16
        %s452 = scalar_lea.vmem [#allocation6], %s451
        %s453 = smul.u32 2, %s30
        %p454 = scmp.lt.s32.totalorder %s453, 3
        %s455 = scalar_select %p454, %s453, 3
        %s456 = smul.addr %s455, 8
        %s457 = scalar_lea.vmem %s3, %s456
        %s458 = smul.u32 2, %s30
        %p459 = scmp.lt.s32.totalorder %s30, 1
        %s460 = scalar_select %p459, %s30, 1
        %s461 = smul.addr %s460, 4
        %s462 = smul.addr %s461, 8
        %s463 = scalar_lea.vmem %s4, %s462
        %s464 = smul.u32 2, %s30
        %s465 = smul.u32 2, %s30
        %p466 = scmp.lt.s32.totalorder %s465, 3
        %s467 = scalar_select %p466, %s465, 3
        %s468 = smul.addr %s467, 4
        %s469 = smul.addr %s468, 8
        %s470 = scalar_lea.vmem %s6, %s469
        %s471 = smul.u32 2, %s30
        %s472 = smul.u32 2, %s30
        %p473 = scmp.lt.s32.totalorder %s472, 3
        %s474 = scalar_select %p473, %s472, 3
        %s475 = smul.addr %s474, 8
        %s476 = scalar_lea.vmem %s7, %s475
        %s477 = smul.u32 2, %s30
        %s478 = smul.u32 2, %s30
        %s479 = smul.u32 2, %s30
        %v480 = vld [vmem:[%s0] sm:$0xff]
        %vm481 = vcmask 261120
        %v482 = vsel %vm481, %v480, 0.0
        %483 = vadd.xlane.f32.xlu0 %v482
        %v484 = vpop.xlane.xlu0 %483
        %v485 = vrcp.pop 32.0
        %v486 = vmul.f32 %v484, %v485
        %v487 = vsub.f32 %v480, %v486
        %v488 = vmul.f32 %v487, %v487
        %v489 = vsel %vm481, %v488, 0.0
        %490 = vadd.xlane.f32.xlu0 %v489
        %v491 = vpop.xlane.xlu0 %490
        %v492 = vmul.f32 %v491, %v485
        %v493 = vadd.f32 %v492, 1e-05
        %v494 = vrsqrt.pop %v493
        %v495 = vmul.f32 %v487, %v494
        %v496 = vld [vmem:[%s1] sm:$0x1]
        %v498 = vlaneseq
        %v499 = vshrl.u32 %v498, 7
        %v500 = vsub.s32 0, %v499
        %v501 = vrot.slane %v496, %v500
        %v503 = vmul.f32 %v495, %v501
        %v504 = vld [vmem:[%s2] sm:$0x1]
        %v506 = vlaneseq
        %v507 = vshrl.u32 %v506, 7
        %v508 = vsub.s32 0, %v507
        %v509 = vrot.slane %v504, %v508
        %v511 = vadd.f32 %v503, %v509
        %v512 = vld [vmem:[%s476] sm:$0x3f]
        %v513 = vld [vmem:[%s476 + $0x8] sm:$0x3f]
        %v514 = vld [vmem:[%s463] sm:$0xff]
        %v515 = vld [vmem:[%s463 + $0x8] sm:$0xff]
        %v516 = vld [vmem:[%s463 + $0x10] sm:$0xff]
        %v517 = vld [vmem:[%s463 + $0x18] sm:$0xff]
        %v519 = vsel %vm481, %v511, 0
        %521 = vmatprep.subr.mxu0 0.0
        %522 = vmatpush1.msra.mxu0 0.0
        %523 = vmatprep.subr.mxu0 0.0
        %524 = vmatpush1.msra.mxu0 0.0
        %525 = vmatprep.subr.mxu0 0.0
        %526 = vmatpush1.msra.mxu0 0.0
        %527 = vmatprep.subr.mxu0 0.0
        %528 = vmatpush1.msra.mxu0 0.0
        %529 = vmatprep.subr.mxu0 0.0
        %530 = vmatpush1.msra.mxu0 0.0
        %531 = vmatprep.subr.mxu0 0.0
        %532 = vmatpush1.msra.mxu0 0.0
        %533 = vmatprep.subr.mxu0 0.0
        %534 = vmatpush1.msra.mxu0 0.0
        %535 = vmatprep.subr.mxu0 0.0
        %536 = vmatpush1.msra.mxu0 0.0
        %537 = vmatprep.subr.mxu0 0.0
        %538 = vmatpush1.msra.mxu0 0.0
        %539 = vmatprep.subr.mxu0 0.0
        %540 = vmatpush1.msra.mxu0 0.0
        %541 = vmatprep.subr.mxu0 0.0
        %542 = vmatpush1.msra.mxu0 0.0
        %543 = vmatprep.subr.mxu0 0.0
        %544 = vmatpush1.msra.mxu0 0.0
        %545 = vmatprep.subr.mxu0 0.0
        %546 = vmatpush1.msra.mxu0 %v517
        %547 = vmatprep.subr.mxu0 0.0
        %548 = vmatpush1.msra.mxu0 %v516
        %549 = vmatprep.subr.mxu0 0.0
        %550 = vmatpush1.msra.mxu0 %v515
        %551 = vmatprep.subr.mxu0 0.0
        %552 = vmatpush1.msra.mxu0 %v514
        %553 = vmatprep.subr.mxu0 0.0
        %554 = vmatpush2.msra.mxu0 0.0
        %555 = vmatprep.subr.mxu0 0.0
        %556 = vmatpush2.msra.mxu0 0.0
        %557 = vmatprep.subr.mxu0 0.0
        %558 = vmatpush2.msra.mxu0 0.0
        %559 = vmatprep.subr.mxu0 0.0
        %560 = vmatpush2.msra.mxu0 0.0
        %561 = vmatprep.subr.mxu0 0.0
        %562 = vmatpush2.msra.mxu0 0.0
        %563 = vmatprep.subr.mxu0 0.0
        %564 = vmatpush2.msra.mxu0 0.0
        %565 = vmatprep.subr.mxu0 0.0
        %566 = vmatpush2.msra.mxu0 0.0
        %567 = vmatprep.subr.mxu0 0.0
        %568 = vmatpush2.msra.mxu0 0.0
        %569 = vmatprep.subr.mxu0 0.0
        %570 = vmatpush2.msra.mxu0 0.0
        %571 = vmatprep.subr.mxu0 0.0
        %572 = vmatpush2.msra.mxu0 0.0
        %573 = vmatprep.subr.mxu0 0.0
        %574 = vmatpush2.msra.mxu0 0.0
        %575 = vmatprep.subr.mxu0 0.0
        %576 = vmatpush2.msra.mxu0 0.0
        %577 = vmatprep.subr.mxu0 0.0
        %578 = vmatpush2.msra.mxu0 0.0
        %579 = vmatprep.subr.mxu0 0.0
        %580 = vmatpush2.msra.mxu0 0.0
        %581 = vmatprep.subr.mxu0 0.0
        %582 = vmatpush2.msra.mxu0 0.0
        %583 = vmatprep.subr.mxu0 0.0
        %584 = vmatpush2.msra.mxu0 0.0
        %585 = vmatprep.mubr.f32.mxu0 0.0
        %586 = vmatmul.mubr.f32.gmra.mxu0 %v519
        %v587 = vpop.f32.mrf.mxu0
        %v588 = vadd.f32 0.0, %v587
        %v589 = vpop.f32.mrf.mxu0
        %590 = vdwg.mxu0
        %592 = vrot.lane.b32.xlu0 %v588, 96
        %v593 = vpop.permute.xlu0 %592
        %v595 = vlaneseq
        %v596 = vshrl.u32 %v595, 7
        %v597 = vsub.s32 0, %v596
        %v598 = vrot.slane %v512, %v597
        %v599 = vlaneseq
        %v600 = vshrl.u32 %v599, 7
        %v601 = vsub.s32 0, %v600
        %v602 = vrot.slane %v513, %v601
        %v603 = vadd.f32 %v588, %v598
        %v604 = vadd.f32 %v593, %v602
        %v605 = vld [vmem:[%s392] sm:$0xff]
        %v606 = vld [vmem:[%s392 + $0x8] sm:$0xff]
        %v607 = vld [vmem:[%s392 + $0x10] sm:$0xff]
        %v608 = vld [vmem:[%s392 + $0x18] sm:$0xff]
        %v609 = vld [vmem:[%s392 + $0x20] sm:$0xff]
        %v610 = vld [vmem:[%s392 + $0x28] sm:$0xff]
        %v611 = vld [vmem:[%s392 + $0x30] sm:$0xff]
        %v612 = vld [vmem:[%s392 + $0x38] sm:$0xff]
        %s613 = scalar_lea.vmem %s392, 64 [#allocation2]
        %v614 = vld [vmem:[%s613] sm:$0xff]
        %v615 = vld [vmem:[%s613 + $0x8] sm:$0xff]
        %v616 = vld [vmem:[%s613 + $0x10] sm:$0xff]
        %v617 = vld [vmem:[%s613 + $0x18] sm:$0xff]
        %v618 = vld [vmem:[%s613 + $0x20] sm:$0xff]
        %v619 = vld [vmem:[%s613 + $0x28] sm:$0xff]
        %v620 = vld [vmem:[%s613 + $0x30] sm:$0xff]
        %v621 = vld [vmem:[%s613 + $0x38] sm:$0xff]
        %v622 = vld [vmem:[%s457] sm:$0xff]
        %v623 = vld [vmem:[%s457 + $0x8] sm:$0xff]
        %v625 = vsel %vm481, %v603, 0
        %627 = vmatprep.subr.mxu0 0.0
        %628 = vmatpush1.msra.mxu0 0.0
        %629 = vmatprep.subr.mxu0 0.0
        %630 = vmatpush1.msra.mxu0 0.0
        %631 = vmatprep.subr.mxu0 0.0
        %632 = vmatpush1.msra.mxu0 0.0
        %633 = vmatprep.subr.mxu0 0.0
        %634 = vmatpush1.msra.mxu0 0.0
        %635 = vmatprep.subr.mxu0 0.0
        %636 = vmatpush1.msra.mxu0 0.0
        %637 = vmatprep.subr.mxu0 0.0
        %638 = vmatpush1.msra.mxu0 0.0
        %639 = vmatprep.subr.mxu0 0.0
        %640 = vmatpush1.msra.mxu0 0.0
        %641 = vmatprep.subr.mxu0 0.0
        %642 = vmatpush1.msra.mxu0 0.0
        %643 = vmatprep.subr.mxu0 0.0
        %644 = vmatpush1.msra.mxu0 0.0
        %645 = vmatprep.subr.mxu0 0.0
        %646 = vmatpush1.msra.mxu0 0.0
        %647 = vmatprep.subr.mxu0 0.0
        %648 = vmatpush1.msra.mxu0 0.0
        %649 = vmatprep.subr.mxu0 0.0
        %650 = vmatpush1.msra.mxu0 0.0
        %651 = vmatprep.subr.mxu0 0.0
        %652 = vmatpush1.msra.mxu0 %v608
        %653 = vmatprep.subr.mxu0 0.0
        %654 = vmatpush1.msra.mxu0 %v607
        %655 = vmatprep.subr.mxu0 0.0
        %656 = vmatpush1.msra.mxu0 %v606
        %657 = vmatprep.subr.mxu0 0.0
        %658 = vmatpush1.msra.mxu0 %v605
        %659 = vmatprep.subr.mxu0 0.0
        %660 = vmatpush2.msra.mxu0 0.0
        %661 = vmatprep.subr.mxu0 0.0
        %662 = vmatpush2.msra.mxu0 0.0
        %663 = vmatprep.subr.mxu0 0.0
        %664 = vmatpush2.msra.mxu0 0.0
        %665 = vmatprep.subr.mxu0 0.0
        %666 = vmatpush2.msra.mxu0 0.0
        %667 = vmatprep.subr.mxu0 0.0
        %668 = vmatpush2.msra.mxu0 0.0
        %669 = vmatprep.subr.mxu0 0.0
        %670 = vmatpush2.msra.mxu0 0.0
        %671 = vmatprep.subr.mxu0 0.0
        %672 = vmatpush2.msra.mxu0 0.0
        %673 = vmatprep.subr.mxu0 0.0
        %674 = vmatpush2.msra.mxu0 0.0
        %675 = vmatprep.subr.mxu0 0.0
        %676 = vmatpush2.msra.mxu0 0.0
        %677 = vmatprep.subr.mxu0 0.0
        %678 = vmatpush2.msra.mxu0 0.0
        %679 = vmatprep.subr.mxu0 0.0
        %680 = vmatpush2.msra.mxu0 0.0
        %681 = vmatprep.subr.mxu0 0.0
        %682 = vmatpush2.msra.mxu0 0.0
        %683 = vmatprep.subr.mxu0 0.0
        %684 = vmatpush2.msra.mxu0 0.0
        %685 = vmatprep.subr.mxu0 0.0
        %686 = vmatpush2.msra.mxu0 0.0
        %687 = vmatprep.subr.mxu0 0.0
        %688 = vmatpush2.msra.mxu0 0.0
        %689 = vmatprep.subr.mxu0 0.0
        %690 = vmatpush2.msra.mxu0 0.0
        %691 = vmatprep.mubr.f32.mxu0 0.0
        %692 = vmatmul.mubr.f32.gmra.mxu0 %v625
        %v693 = vpop.f32.mrf.mxu0
        %v694 = vadd.f32 0.0, %v693
        %v695 = vpop.f32.mrf.mxu0
        %696 = vdwg.mxu0
        %v698 = vsel %vm481, %v604, 0
        %700 = vmatprep.subr.mxu0 0.0
        %701 = vmatpush1.msra.mxu0 0.0
        %702 = vmatprep.subr.mxu0 0.0
        %703 = vmatpush1.msra.mxu0 0.0
        %704 = vmatprep.subr.mxu0 0.0
        %705 = vmatpush1.msra.mxu0 0.0
        %706 = vmatprep.subr.mxu0 0.0
        %707 = vmatpush1.msra.mxu0 0.0
        %708 = vmatprep.subr.mxu0 0.0
        %709 = vmatpush1.msra.mxu0 0.0
        %710 = vmatprep.subr.mxu0 0.0
        %711 = vmatpush1.msra.mxu0 0.0
        %712 = vmatprep.subr.mxu0 0.0
        %713 = vmatpush1.msra.mxu0 0.0
        %714 = vmatprep.subr.mxu0 0.0
        %715 = vmatpush1.msra.mxu0 0.0
        %716 = vmatprep.subr.mxu0 0.0
        %717 = vmatpush1.msra.mxu0 0.0
        %718 = vmatprep.subr.mxu0 0.0
        %719 = vmatpush1.msra.mxu0 0.0
        %720 = vmatprep.subr.mxu0 0.0
        %721 = vmatpush1.msra.mxu0 0.0
        %722 = vmatprep.subr.mxu0 0.0
        %723 = vmatpush1.msra.mxu0 0.0
        %724 = vmatprep.subr.mxu0 0.0
        %725 = vmatpush1.msra.mxu0 %v612
        %726 = vmatprep.subr.mxu0 0.0
        %727 = vmatpush1.msra.mxu0 %v611
        %728 = vmatprep.subr.mxu0 0.0
        %729 = vmatpush1.msra.mxu0 %v610
        %730 = vmatprep.subr.mxu0 0.0
        %731 = vmatpush1.msra.mxu0 %v609
        %732 = vmatprep.subr.mxu0 0.0
        %733 = vmatpush2.msra.mxu0 0.0
        %734 = vmatprep.subr.mxu0 0.0
        %735 = vmatpush2.msra.mxu0 0.0
        %736 = vmatprep.subr.mxu0 0.0
        %737 = vmatpush2.msra.mxu0 0.0
        %738 = vmatprep.subr.mxu0 0.0
        %739 = vmatpush2.msra.mxu0 0.0
        %740 = vmatprep.subr.mxu0 0.0
        %741 = vmatpush2.msra.mxu0 0.0
        %742 = vmatprep.subr.mxu0 0.0
        %743 = vmatpush2.msra.mxu0 0.0
        %744 = vmatprep.subr.mxu0 0.0
        %745 = vmatpush2.msra.mxu0 0.0
        %746 = vmatprep.subr.mxu0 0.0
        %747 = vmatpush2.msra.mxu0 0.0
        %748 = vmatprep.subr.mxu0 0.0
        %749 = vmatpush2.msra.mxu0 0.0
        %750 = vmatprep.subr.mxu0 0.0
        %751 = vmatpush2.msra.mxu0 0.0
        %752 = vmatprep.subr.mxu0 0.0
        %753 = vmatpush2.msra.mxu0 0.0
        %754 = vmatprep.subr.mxu0 0.0
        %755 = vmatpush2.msra.mxu0 0.0
        %756 = vmatprep.subr.mxu0 0.0
        %757 = vmatpush2.msra.mxu0 0.0
        %758 = vmatprep.subr.mxu0 0.0
        %759 = vmatpush2.msra.mxu0 0.0
        %760 = vmatprep.subr.mxu0 0.0
        %761 = vmatpush2.msra.mxu0 0.0
        %762 = vmatprep.subr.mxu0 0.0
        %763 = vmatpush2.msra.mxu0 0.0
        %764 = vmatprep.mubr.f32.mxu0 0.0
        %765 = vmatmul.mubr.f32.gmra.mxu0 %v698
        %v766 = vpop.f32.mrf.mxu0
        %v767 = vadd.f32 0.0, %v766
        %v768 = vpop.f32.mrf.mxu0
        %769 = vdwg.mxu0
        %v771 = vsel %vm481, %v622, 0
        %773 = vmatprep.subr.mxu0 0.0
        %774 = vmatpush1.msra.mxu0 0.0
        %775 = vmatprep.subr.mxu0 0.0
        %776 = vmatpush1.msra.mxu0 0.0
        %777 = vmatprep.subr.mxu0 0.0
        %778 = vmatpush1.msra.mxu0 0.0
        %779 = vmatprep.subr.mxu0 0.0
        %780 = vmatpush1.msra.mxu0 0.0
        %781 = vmatprep.subr.mxu0 0.0
        %782 = vmatpush1.msra.mxu0 0.0
        %783 = vmatprep.subr.mxu0 0.0
        %784 = vmatpush1.msra.mxu0 0.0
        %785 = vmatprep.subr.mxu0 0.0
        %786 = vmatpush1.msra.mxu0 0.0
        %787 = vmatprep.subr.mxu0 0.0
        %788 = vmatpush1.msra.mxu0 0.0
        %789 = vmatprep.subr.mxu0 0.0
        %790 = vmatpush1.msra.mxu0 0.0
        %791 = vmatprep.subr.mxu0 0.0
        %792 = vmatpush1.msra.mxu0 0.0
        %793 = vmatprep.subr.mxu0 0.0
        %794 = vmatpush1.msra.mxu0 0.0
        %795 = vmatprep.subr.mxu0 0.0
        %796 = vmatpush1.msra.mxu0 0.0
        %797 = vmatprep.subr.mxu0 0.0
        %798 = vmatpush1.msra.mxu0 %v617
        %799 = vmatprep.subr.mxu0 0.0
        %800 = vmatpush1.msra.mxu0 %v616
        %801 = vmatprep.subr.mxu0 0.0
        %802 = vmatpush1.msra.mxu0 %v615
        %803 = vmatprep.subr.mxu0 0.0
        %804 = vmatpush1.msra.mxu0 %v614
        %805 = vmatprep.subr.mxu0 0.0
        %806 = vmatpush2.msra.mxu0 0.0
        %807 = vmatprep.subr.mxu0 0.0
        %808 = vmatpush2.msra.mxu0 0.0
        %809 = vmatprep.subr.mxu0 0.0
        %810 = vmatpush2.msra.mxu0 0.0
        %811 = vmatprep.subr.mxu0 0.0
        %812 = vmatpush2.msra.mxu0 0.0
        %813 = vmatprep.subr.mxu0 0.0
        %814 = vmatpush2.msra.mxu0 0.0
        %815 = vmatprep.subr.mxu0 0.0
        %816 = vmatpush2.msra.mxu0 0.0
        %817 = vmatprep.subr.mxu0 0.0
        %818 = vmatpush2.msra.mxu0 0.0
        %819 = vmatprep.subr.mxu0 0.0
        %820 = vmatpush2.msra.mxu0 0.0
        %821 = vmatprep.subr.mxu0 0.0
        %822 = vmatpush2.msra.mxu0 0.0
        %823 = vmatprep.subr.mxu0 0.0
        %824 = vmatpush2.msra.mxu0 0.0
        %825 = vmatprep.subr.mxu0 0.0
        %826 = vmatpush2.msra.mxu0 0.0
        %827 = vmatprep.subr.mxu0 0.0
        %828 = vmatpush2.msra.mxu0 0.0
        %829 = vmatprep.subr.mxu0 0.0
        %830 = vmatpush2.msra.mxu0 0.0
        %831 = vmatprep.subr.mxu0 0.0
        %832 = vmatpush2.msra.mxu0 0.0
        %833 = vmatprep.subr.mxu0 0.0
        %834 = vmatpush2.msra.mxu0 0.0
        %835 = vmatprep.subr.mxu0 0.0
        %836 = vmatpush2.msra.mxu0 0.0
        %837 = vmatprep.mubr.f32.mxu0 0.0
        %838 = vmatmul.mubr.f32.gmra.mxu0 %v771
        %v839 = vpop.f32.mrf.mxu0
        %v840 = vadd.f32 0.0, %v839
        %v841 = vpop.f32.mrf.mxu0
        %842 = vdwg.mxu0
        %v844 = vsel %vm481, %v623, 0
        %846 = vmatprep.subr.mxu0 0.0
        %847 = vmatpush1.msra.mxu0 0.0
        %848 = vmatprep.subr.mxu0 0.0
        %849 = vmatpush1.msra.mxu0 0.0
        %850 = vmatprep.subr.mxu0 0.0
        %851 = vmatpush1.msra.mxu0 0.0
        %852 = vmatprep.subr.mxu0 0.0
        %853 = vmatpush1.msra.mxu0 0.0
        %854 = vmatprep.subr.mxu0 0.0
        %855 = vmatpush1.msra.mxu0 0.0
        %856 = vmatprep.subr.mxu0 0.0
        %857 = vmatpush1.msra.mxu0 0.0
        %858 = vmatprep.subr.mxu0 0.0
        %859 = vmatpush1.msra.mxu0 0.0
        %860 = vmatprep.subr.mxu0 0.0
        %861 = vmatpush1.msra.mxu0 0.0
        %862 = vmatprep.subr.mxu0 0.0
        %863 = vmatpush1.msra.mxu0 0.0
        %864 = vmatprep.subr.mxu0 0.0
        %865 = vmatpush1.msra.mxu0 0.0
        %866 = vmatprep.subr.mxu0 0.0
        %867 = vmatpush1.msra.mxu0 0.0
        %868 = vmatprep.subr.mxu0 0.0
        %869 = vmatpush1.msra.mxu0 0.0
        %870 = vmatprep.subr.mxu0 0.0
        %871 = vmatpush1.msra.mxu0 %v621
        %872 = vmatprep.subr.mxu0 0.0
        %873 = vmatpush1.msra.mxu0 %v620
        %874 = vmatprep.subr.mxu0 0.0
        %875 = vmatpush1.msra.mxu0 %v619
        %876 = vmatprep.subr.mxu0 0.0
        %877 = vmatpush1.msra.mxu0 %v618
        %878 = vmatprep.subr.mxu0 0.0
        %879 = vmatpush2.msra.mxu0 0.0
        %880 = vmatprep.subr.mxu0 0.0
        %881 = vmatpush2.msra.mxu0 0.0
        %882 = vmatprep.subr.mxu0 0.0
        %883 = vmatpush2.msra.mxu0 0.0
        %884 = vmatprep.subr.mxu0 0.0
        %885 = vmatpush2.msra.mxu0 0.0
        %886 = vmatprep.subr.mxu0 0.0
        %887 = vmatpush2.msra.mxu0 0.0
        %888 = vmatprep.subr.mxu0 0.0
        %889 = vmatpush2.msra.mxu0 0.0
        %890 = vmatprep.subr.mxu0 0.0
        %891 = vmatpush2.msra.mxu0 0.0
        %892 = vmatprep.subr.mxu0 0.0
        %893 = vmatpush2.msra.mxu0 0.0
        %894 = vmatprep.subr.mxu0 0.0
        %895 = vmatpush2.msra.mxu0 0.0
        %896 = vmatprep.subr.mxu0 0.0
        %897 = vmatpush2.msra.mxu0 0.0
        %898 = vmatprep.subr.mxu0 0.0
        %899 = vmatpush2.msra.mxu0 0.0
        %900 = vmatprep.subr.mxu0 0.0
        %901 = vmatpush2.msra.mxu0 0.0
        %902 = vmatprep.subr.mxu0 0.0
        %903 = vmatpush2.msra.mxu0 0.0
        %904 = vmatprep.subr.mxu0 0.0
        %905 = vmatpush2.msra.mxu0 0.0
        %906 = vmatprep.subr.mxu0 0.0
        %907 = vmatpush2.msra.mxu0 0.0
        %908 = vmatprep.subr.mxu0 0.0
        %909 = vmatpush2.msra.mxu0 0.0
        %910 = vmatprep.mubr.f32.mxu0 0.0
        %911 = vmatmul.mubr.f32.gmra.mxu0 %v844
        %v912 = vpop.f32.mrf.mxu0
        %v913 = vadd.f32 0.0, %v912
        %v914 = vpop.f32.mrf.mxu0
        %915 = vdwg.mxu0
        %v916 = vadd.f32 %v694, %v840
        %v917 = vadd.f32 %v767, %v913
        %v918 = vlaneseq
        %v919 = vshrl.u32 %v918, 7
        %v920 = vsub.s32 1, %v919
        %v921 = vrot.slane %v512, %v920
        %v922 = vlaneseq
        %v923 = vshrl.u32 %v922, 7
        %v924 = vsub.s32 1, %v923
        %v925 = vrot.slane %v513, %v924
        %v926 = vadd.f32 %v916, %v921
        %v927 = vadd.f32 %v917, %v925
        %v928 = vxor.u32 %v926, 2147483648
        %v929 = vxor.u32 %v927, 2147483648
        %v930 = vmul.f32 %v928, 1.442695
        %v931 = vpow.pop %v930
        %v932 = vmul.f32 %v929, 1.442695
        %v933 = vpow.pop %v932
        %v934 = vadd.f32 %v931, 1.0
        %v935 = vadd.f32 %v933, 1.0
        %v936 = vrcp.pop %v934
        %v937 = vmul.f32 1.0, %v936
        %v938 = vrcp.pop %v935
        %v939 = vmul.f32 1.0, %v938
        %v940 = vlaneseq
        %v941 = vshrl.u32 %v940, 7
        %v942 = vsub.s32 2, %v941
        %v943 = vrot.slane %v512, %v942
        %v944 = vlaneseq
        %v945 = vshrl.u32 %v944, 7
        %v946 = vsub.s32 2, %v945
        %v947 = vrot.slane %v513, %v946
        %950 = vrot.lane.b32.xlu0 %v943, 32
        %v951 = vpop.permute.xlu0 %950
        %952 = vrot.lane.b32.xlu0 %v947, 32
        %v953 = vpop.permute.xlu0 %952
        %v956 = vadd.f32 %v916, %v951
        %v957 = vadd.f32 %v917, %v953
        %v958 = vxor.u32 %v956, 2147483648
        %v959 = vxor.u32 %v957, 2147483648
        %v960 = vmul.f32 %v958, 1.442695
        %v961 = vpow.pop %v960
        %v962 = vmul.f32 %v959, 1.442695
        %v963 = vpow.pop %v962
        %v964 = vadd.f32 %v961, 1.0
        %v965 = vadd.f32 %v963, 1.0
        %v966 = vrcp.pop %v964
        %v967 = vmul.f32 1.0, %v966
        %v968 = vrcp.pop %v965
        %v969 = vmul.f32 1.0, %v968
        %v970 = vlaneseq
        %v971 = vshrl.u32 %v970, 7
        %v972 = vsub.s32 3, %v971
        %v973 = vrot.slane %v512, %v972
        %v974 = vlaneseq
        %v975 = vshrl.u32 %v974, 7
        %v976 = vsub.s32 3, %v975
        %v977 = vrot.slane %v513, %v976
        %980 = vrot.lane.b32.xlu0 %v973, 64
        %v981 = vpop.permute.xlu0 %980
        %982 = vrot.lane.b32.xlu0 %v977, 64
        %v983 = vpop.permute.xlu0 %982
        %v986 = vadd.f32 %v694, %v981
        %v987 = vadd.f32 %v767, %v983
        %v988 = vlaneseq
        %v989 = vshrl.u32 %v988, 7
        %v990 = vsub.s32 4, %v989
        %v991 = vrot.slane %v512, %v990
        %v992 = vlaneseq
        %v993 = vshrl.u32 %v992, 7
        %v994 = vsub.s32 4, %v993
        %v995 = vrot.slane %v513, %v994
        %998 = vrot.lane.b32.xlu0 %v991, 64
        %v999 = vpop.permute.xlu0 %998
        %1000 = vrot.lane.b32.xlu0 %v995, 64
        %v1001 = vpop.permute.xlu0 %1000
        %v1004 = vadd.f32 %v840, %v999
        %v1005 = vadd.f32 %v913, %v1001
        %1008 = vrot.lane.b32.xlu0 %v1004, 64
        %v1009 = vpop.permute.xlu0 %1008
        %1010 = vrot.lane.b32.xlu0 %v1005, 64
        %v1011 = vpop.permute.xlu0 %1010
        %v1014 = vmul.f32 %v937, %v1009
        %v1015 = vmul.f32 %v939, %v1011
        %1018 = vrot.lane.b32.xlu0 %v1014, 64
        %v1019 = vpop.permute.xlu0 %1018
        %1020 = vrot.lane.b32.xlu0 %v1015, 64
        %v1021 = vpop.permute.xlu0 %1020
        %v1024 = vadd.f32 %v986, %v1019
        %v1025 = vadd.f32 %v987, %v1021
        %v1026 = vtanh.pop %v1024
        %v1027 = vtanh.pop %v1025
        %v1028 = vsub.f32 1.0, %v967
        %v1029 = vsub.f32 1.0, %v969
        %1032 = vrot.lane.b32.xlu0 %v1026, 96
        %v1033 = vpop.permute.xlu0 %1032
        %1034 = vrot.lane.b32.xlu0 %v1027, 96
        %v1035 = vpop.permute.xlu0 %1034
        %v1038 = vmul.f32 %v1028, %v1033
        %v1039 = vmul.f32 %v1029, %v1035
        %1040 = vrot.lane.b32.xlu0 %v622, 32
        %v1041 = vpop.permute.xlu0 %1040
        %1042 = vrot.lane.b32.xlu0 %v623, 32
        %v1043 = vpop.permute.xlu0 %1042
        %v1046 = vmul.f32 %v967, %v1041
        %v1047 = vmul.f32 %v969, %v1043
        %v1048 = vadd.f32 %v1038, %v1046
        %v1049 = vadd.f32 %v1039, %v1047
        %v1050 = vld [vmem:[%s470] sm:$0xff]
        %v1051 = vld [vmem:[%s470 + $0x8] sm:$0xff]
        %v1052 = vld [vmem:[%s470 + $0x10] sm:$0xff]
        %v1053 = vld [vmem:[%s470 + $0x18] sm:$0xff]
        %v1054 = vld [vmem:[%s470 + $0x20] sm:$0xff]
        %v1055 = vld [vmem:[%s470 + $0x28] sm:$0xff]
        %v1056 = vld [vmem:[%s470 + $0x30] sm:$0xff]
        %v1057 = vld [vmem:[%s470 + $0x38] sm:$0xff]
        %v1058 = vlaneseq
        %v1059 = vshrl.u32 %v1058, 7
        %v1060 = vsub.s32 5, %v1059
        %v1061 = vrot.slane %v512, %v1060
        %v1062 = vlaneseq
        %v1063 = vshrl.u32 %v1062, 7
        %v1064 = vsub.s32 5, %v1063
        %v1065 = vrot.slane %v513, %v1064
        %1067 = vrot.lane.b32.xlu0 %v1048, 96
        %v1068 = vpop.permute.xlu0 %1067
        %v1069 = vsel %vm481, %v1068, 0
        %1071 = vmatprep.subr.mxu0 0.0
        %1072 = vmatpush1.msra.mxu0 0.0
        %1073 = vmatprep.subr.mxu0 0.0
        %1074 = vmatpush1.msra.mxu0 0.0
        %1075 = vmatprep.subr.mxu0 0.0
        %1076 = vmatpush1.msra.mxu0 0.0
        %1077 = vmatprep.subr.mxu0 0.0
        %1078 = vmatpush1.msra.mxu0 0.0
        %1079 = vmatprep.subr.mxu0 0.0
        %1080 = vmatpush1.msra.mxu0 0.0
        %1081 = vmatprep.subr.mxu0 0.0
        %1082 = vmatpush1.msra.mxu0 0.0
        %1083 = vmatprep.subr.mxu0 0.0
        %1084 = vmatpush1.msra.mxu0 0.0
        %1085 = vmatprep.subr.mxu0 0.0
        %1086 = vmatpush1.msra.mxu0 0.0
        %1087 = vmatprep.subr.mxu0 0.0
        %1088 = vmatpush1.msra.mxu0 0.0
        %1089 = vmatprep.subr.mxu0 0.0
        %1090 = vmatpush1.msra.mxu0 0.0
        %1091 = vmatprep.subr.mxu0 0.0
        %1092 = vmatpush1.msra.mxu0 0.0
        %1093 = vmatprep.subr.mxu0 0.0
        %1094 = vmatpush1.msra.mxu0 0.0
        %1095 = vmatprep.subr.mxu0 0.0
        %1096 = vmatpush1.msra.mxu0 %v1053
        %1097 = vmatprep.subr.mxu0 0.0
        %1098 = vmatpush1.msra.mxu0 %v1052
        %1099 = vmatprep.subr.mxu0 0.0
        %1100 = vmatpush1.msra.mxu0 %v1051
        %1101 = vmatprep.subr.mxu0 0.0
        %1102 = vmatpush1.msra.mxu0 %v1050
        %1103 = vmatprep.subr.mxu0 0.0
        %1104 = vmatpush2.msra.mxu0 0.0
        %1105 = vmatprep.subr.mxu0 0.0
        %1106 = vmatpush2.msra.mxu0 0.0
        %1107 = vmatprep.subr.mxu0 0.0
        %1108 = vmatpush2.msra.mxu0 0.0
        %1109 = vmatprep.subr.mxu0 0.0
        %1110 = vmatpush2.msra.mxu0 0.0
        %1111 = vmatprep.subr.mxu0 0.0
        %1112 = vmatpush2.msra.mxu0 0.0
        %1113 = vmatprep.subr.mxu0 0.0
        %1114 = vmatpush2.msra.mxu0 0.0
        %1115 = vmatprep.subr.mxu0 0.0
        %1116 = vmatpush2.msra.mxu0 0.0
        %1117 = vmatprep.subr.mxu0 0.0
        %1118 = vmatpush2.msra.mxu0 0.0
        %1119 = vmatprep.subr.mxu0 0.0
        %1120 = vmatpush2.msra.mxu0 0.0
        %1121 = vmatprep.subr.mxu0 0.0
        %1122 = vmatpush2.msra.mxu0 0.0
        %1123 = vmatprep.subr.mxu0 0.0
        %1124 = vmatpush2.msra.mxu0 0.0
        %1125 = vmatprep.subr.mxu0 0.0
        %1126 = vmatpush2.msra.mxu0 0.0
        %1127 = vmatprep.subr.mxu0 0.0
        %1128 = vmatpush2.msra.mxu0 0.0
        %1129 = vmatprep.subr.mxu0 0.0
        %1130 = vmatpush2.msra.mxu0 0.0
        %1131 = vmatprep.subr.mxu0 0.0
        %1132 = vmatpush2.msra.mxu0 0.0
        %1133 = vmatprep.subr.mxu0 0.0
        %1134 = vmatpush2.msra.mxu0 0.0
        %1135 = vmatprep.mubr.f32.mxu0 0.0
        %1136 = vmatmul.mubr.f32.gmra.mxu0 %v1069
        %v1137 = vpop.f32.mrf.mxu0
        %v1138 = vadd.f32 %v1061, %v1137
        %v1139 = vpop.f32.mrf.mxu0
        %1140 = vdwg.mxu0
        %1142 = vrot.lane.b32.xlu0 %v1049, 96
        %v1143 = vpop.permute.xlu0 %1142
        %v1144 = vsel %vm481, %v1143, 0
        %1146 = vmatprep.subr.mxu0 0.0
        %1147 = vmatpush1.msra.mxu0 0.0
        %1148 = vmatprep.subr.mxu0 0.0
        %1149 = vmatpush1.msra.mxu0 0.0
        %1150 = vmatprep.subr.mxu0 0.0
        %1151 = vmatpush1.msra.mxu0 0.0
        %1152 = vmatprep.subr.mxu0 0.0
        %1153 = vmatpush1.msra.mxu0 0.0
        %1154 = vmatprep.subr.mxu0 0.0
        %1155 = vmatpush1.msra.mxu0 0.0
        %1156 = vmatprep.subr.mxu0 0.0
        %1157 = vmatpush1.msra.mxu0 0.0
        %1158 = vmatprep.subr.mxu0 0.0
        %1159 = vmatpush1.msra.mxu0 0.0
        %1160 = vmatprep.subr.mxu0 0.0
        %1161 = vmatpush1.msra.mxu0 0.0
        %1162 = vmatprep.subr.mxu0 0.0
        %1163 = vmatpush1.msra.mxu0 0.0
        %1164 = vmatprep.subr.mxu0 0.0
        %1165 = vmatpush1.msra.mxu0 0.0
        %1166 = vmatprep.subr.mxu0 0.0
        %1167 = vmatpush1.msra.mxu0 0.0
        %1168 = vmatprep.subr.mxu0 0.0
        %1169 = vmatpush1.msra.mxu0 0.0
        %1170 = vmatprep.subr.mxu0 0.0
        %1171 = vmatpush1.msra.mxu0 %v1057
        %1172 = vmatprep.subr.mxu0 0.0
        %1173 = vmatpush1.msra.mxu0 %v1056
        %1174 = vmatprep.subr.mxu0 0.0
        %1175 = vmatpush1.msra.mxu0 %v1055
        %1176 = vmatprep.subr.mxu0 0.0
        %1177 = vmatpush1.msra.mxu0 %v1054
        %1178 = vmatprep.subr.mxu0 0.0
        %1179 = vmatpush2.msra.mxu0 0.0
        %1180 = vmatprep.subr.mxu0 0.0
        %1181 = vmatpush2.msra.mxu0 0.0
        %1182 = vmatprep.subr.mxu0 0.0
        %1183 = vmatpush2.msra.mxu0 0.0
        %1184 = vmatprep.subr.mxu0 0.0
        %1185 = vmatpush2.msra.mxu0 0.0
        %1186 = vmatprep.subr.mxu0 0.0
        %1187 = vmatpush2.msra.mxu0 0.0
        %1188 = vmatprep.subr.mxu0 0.0
        %1189 = vmatpush2.msra.mxu0 0.0
        %1190 = vmatprep.subr.mxu0 0.0
        %1191 = vmatpush2.msra.mxu0 0.0
        %1192 = vmatprep.subr.mxu0 0.0
        %1193 = vmatpush2.msra.mxu0 0.0
        %1194 = vmatprep.subr.mxu0 0.0
        %1195 = vmatpush2.msra.mxu0 0.0
        %1196 = vmatprep.subr.mxu0 0.0
        %1197 = vmatpush2.msra.mxu0 0.0
        %1198 = vmatprep.subr.mxu0 0.0
        %1199 = vmatpush2.msra.mxu0 0.0
        %1200 = vmatprep.subr.mxu0 0.0
        %1201 = vmatpush2.msra.mxu0 0.0
        %1202 = vmatprep.subr.mxu0 0.0
        %1203 = vmatpush2.msra.mxu0 0.0
        %1204 = vmatprep.subr.mxu0 0.0
        %1205 = vmatpush2.msra.mxu0 0.0
        %1206 = vmatprep.subr.mxu0 0.0
        %1207 = vmatpush2.msra.mxu0 0.0
        %1208 = vmatprep.subr.mxu0 0.0
        %1209 = vmatpush2.msra.mxu0 0.0
        %1210 = vmatprep.mubr.f32.mxu0 0.0
        %1211 = vmatmul.mubr.f32.gmra.mxu0 %v1144
        %v1212 = vpop.f32.mrf.mxu0
        %v1213 = vadd.f32 %v1065, %v1212
        %v1214 = vpop.f32.mrf.mxu0
        %1215 = vdwg.mxu0
        %1218 = vst.msk [vmem:[%s452] sm:$0xff] %vm481, %v1068
        %1219 = vst.msk [vmem:[%s452 + $0x8] sm:$0xff] %vm481, %v1143
        %vm1220 = vcmask 64512
        %1221 = vst.msk [vmem:[%s445] sm:$0xff] %vm1220, %v1138
        %1222 = vst.msk [vmem:[%s445 + $0x8] sm:$0xff] %vm1220, %v1213
        %s1223 = sand.u32 %s231, 1
        %s1224 = scalar_lea.sflag [#allocation4], %s1223
        %s1225 = sand.u32 %s231, 1
        %s1226 = smul.addr %s1225, 16
        %s1227 = scalar_lea.vmem [#allocation5], %s1226
        %s1228 = sand.u32 %s257, 1
        %s1229 = scalar_lea.sflag [#allocation7], %s1228
        %s1230 = sand.u32 %s257, 1
        %s1231 = smul.addr %s1230, 16
        %s1232 = scalar_lea.vmem [#allocation6], %s1231
        // Predicated region
        $region57: #{tpu_custom_call.1} parent=51 // pred_check
          %p1233 = pneg %p241
        $region58: #{tpu_custom_call.1} parent=51 // pred_check_branch
          %1235 = sbr.rel (%p1233) target = $region60
        $region59: #{tpu_custom_call.1} parent=51 // pred_region
          %s1236 = smul.u32 2, %s30
          %s1238 = ssub.s32 256, 256
          %1239 = vsyncadd %s1224, %s1238
          %s1240 = smul.addr %s1236, 128
          %s1241 = scalar_lea.hbm %s8, %s1240
          %s1242 = sshll.u32 %s1227, 4
          %s1243 = int_to_ptr.vmem [resolvable:$true] %s1242
          %1248 = dma.vmem_to_hbm [thread:$0]  %s1243, 256, %s1241, %s1224, 128, 128, 8
        $region60: #{tpu_custom_call.1} parent=51 // pred_fallthru
          _
        // Predicated region
        $region61: #{tpu_custom_call.1} parent=51 // pred_check
          %p1249 = pneg %p267
        $region62: #{tpu_custom_call.1} parent=51 // pred_check_branch
          %1251 = sbr.rel (%p1249) target = $region64
        $region63: #{tpu_custom_call.1} parent=51 // pred_region
          %s1252 = smul.u32 2, %s30
          %s1254 = ssub.s32 256, 256
          %1255 = vsyncadd %s1229, %s1254
          %s1256 = smul.addr %s1252, 128
          %s1257 = scalar_lea.hbm %s9, %s1256
          %s1258 = sshll.u32 %s1232, 4
          %s1259 = int_to_ptr.vmem [resolvable:$true] %s1258
          %1264 = dma.vmem_to_hbm [thread:$0]  %s1259, 256, %s1257, %s1229, 128, 128, 8
        $region64: #{tpu_custom_call.1} parent=51 // pred_fallthru
          _
      $region52: #{tpu_custom_call.1} parent=5 // pred_fallthru
        _
      %p1265 = scmp.le.s32.totalorder 2, %s25
      // Predicated region
      $region65: #{tpu_custom_call.1} parent=5 // pred_check
        %p1266 = pneg %p1265
      $region66: #{tpu_custom_call.1} parent=5 // pred_check_branch
        %1268 = sbr.rel (%p1266) target = $region68
      $region67: #{tpu_custom_call.1} parent=5 // pred_region
        %s1269 = ssub.s32 %s25, 2
        // Predicated region
        $region69: #{tpu_custom_call.1} parent=67 // pred_check
          %p1270 = pneg %p247
        $region70: #{tpu_custom_call.1} parent=67 // pred_check_branch
          %1272 = sbr.rel (%p1270) target = $region72
        $region71: #{tpu_custom_call.1} parent=67 // pred_region
          %s1273 = sand.u32 %s232, 1
          %s1274 = scalar_lea.sflag [#allocation4], %s1273
          %s1275 = sand.u32 %s232, 1
          %s1276 = smul.addr %s1275, 16
          %s1277 = scalar_lea.vmem [#allocation5], %s1276
          %1278 = dma.done %s1274, 256
        $region72: #{tpu_custom_call.1} parent=67 // pred_fallthru
          _
        // Predicated region
        $region73: #{tpu_custom_call.1} parent=67 // pred_check
          %p1279 = pneg %p273
        $region74: #{tpu_custom_call.1} parent=67 // pred_check_branch
          %1281 = sbr.rel (%p1279) target = $region76
        $region75: #{tpu_custom_call.1} parent=67 // pred_region
          %s1282 = sand.u32 %s258, 1
          %s1283 = scalar_lea.sflag [#allocation7], %s1282
          %s1284 = sand.u32 %s258, 1
          %s1285 = smul.addr %s1284, 16
          %s1286 = scalar_lea.vmem [#allocation6], %s1285
          %1287 = dma.done %s1283, 256
        $region76: #{tpu_custom_call.1} parent=67 // pred_fallthru
          _
      $region68: #{tpu_custom_call.1} parent=5 // pred_fallthru
        _
    $region6: #{tpu_custom_call.1} parent=1 // loop_footer
      %s29 = sadd.s32 1, %s25
    $region7: #{tpu_custom_call.1} parent=1 // loop_footer_branch
      %24 = sbr.rel target = $region3
    $region8: #{tpu_custom_call.1} parent=1 // loop_exit
      _
    %1288 = vsyncpa [#allocation3], 1
    %s1289 = scalar_lea.sflag [#allocation3], 1
    %1290 = vsyncpa %s1289, 1
    %1291 = vsyncpa [#allocation4], 1
    %s1292 = scalar_lea.sflag [#allocation4], 1
    %1293 = vsyncpa %s1292, 1
    %1294 = vsyncpa [#allocation7], 1
    %s1295 = scalar_lea.sflag [#allocation7], 1
    %1296 = vsyncpa %s1295, 1

</llo_original>
